<compile_context>
chip_gen: v7x
topology: tpu7x:2x2x1
jax: 0.10.0
libtpu: 0.0.40
codegen_flags: <defaults>
</compile_context>

<pallas_src>
import functools

import jax
import jax.numpy as jnp
from jax.experimental import pallas as pl
from jax.experimental.pallas import tpu as pltpu


# --------------------------------------------------------------------------
# Static layer configuration + packed-slab row offsets
# --------------------------------------------------------------------------
def _round_up(n, m):
    return ((n + m - 1) // m) * m


def _static_meta(inputs):
    cfg = [
        dict(Cin=inputs, Cout=16, kw=3, sw=2, kh=3),   # h1 / h1_gates (fused)
        dict(Cin=16,     Cout=32, kw=3, sw=2, kh=3),   # downsample1
        dict(Cin=32,     Cout=32, kw=3, sw=2, kh=3),   # downsample2
        dict(Cin=32,     Cout=64, kw=3, sw=2, kh=6),   # downsample3
    ]
    wrow = 0
    for i, c in enumerate(cfg):
        c["wr"] = wrow                                  # weight-slab row offset
        wrow += _round_up(c["kw"] * c["Cin"], 8)
        c["br"] = i                                     # fused-bias row in p-slab
    cfg[1]["ar"], cfg[2]["ar"], cfg[3]["ar"] = 4, 8, 12  # affine rows (gamma,beta,gamma_g,beta_g)
    return dict(layers=cfg,
                w_rows=_round_up(wrow, 8), w_lanes=128,
                dw_row=16, db_row=17, p_rows=24, p_lanes=128)


def _conv_dims(c, W):
    """TF-'same' 1-D conv geometry along W (H == 1 after unsqueeze)."""
    Wo = -(-W // c["sw"])                              # ceil(W / stride)
    pw = max((Wo - 1) * c["sw"] + c["kw"] - W, 0)
    Wp_read = (Wo - 1) * c["sw"] + c["kw"]             # rows the conv taps touch
    d = dict(c)
    d.update(W=W, Wo=Wo, pad_left=pw // 2, Wp_read=Wp_read, Wp=_round_up(Wp_read, 8))
    return d


# --------------------------------------------------------------------------
# One-time parameter packing: 14 operands -> 2 slabs (fewer, larger DMAs)
# --------------------------------------------------------------------------
def pack_params(params, inputs):
    meta = _static_meta(inputs)
    L = meta["layers"]

    def conv_rows(w, wg, kw, cin):
        kh = w.shape[2]
        i0 = (kh - 1) // 2                             # only kernel row touching H==1 data
        wk = jnp.concatenate([w[:, :, i0, :], wg[:, :, i0, :]], axis=0)  # (2Cout,Cin,kw)
        wk = jnp.transpose(wk, (2, 1, 0)).reshape(kw * cin, -1)          # (kw*Cin,2Cout)
        return wk

    w_slab = jnp.zeros((meta["w_rows"], meta["w_lanes"]), jnp.float32)
    p_slab = jnp.zeros((meta["p_rows"], meta["p_lanes"]), jnp.float32)

    blocks = [
        (params["h1_w"], params["h1_b"], params["h1g_w"], params["h1g_b"], None),
        (params["d1"]["w"], params["d1"]["b"], params["d1"]["wg"], params["d1"]["bg"], params["d1"]),
        (params["d2"]["w"], params["d2"]["b"], params["d2"]["wg"], params["d2"]["bg"], params["d2"]),
        (params["d3"]["w"], params["d3"]["b"], params["d3"]["wg"], params["d3"]["bg"], params["d3"]),
    ]
    for c, (w, b, wg, bg, blk) in zip(L, blocks):
        rows = conv_rows(w, wg, c["kw"], c["Cin"])
        w_slab = w_slab.at[c["wr"]:c["wr"] + c["kw"] * c["Cin"], :2 * c["Cout"]].set(rows)
        p_slab = p_slab.at[c["br"], :2 * c["Cout"]].set(jnp.concatenate([b, bg]))
        if blk is not None:
            aff = jnp.stack([blk["gamma"], blk["beta"], blk["gamma_g"], blk["beta_g"]], axis=0)
            p_slab = p_slab.at[c["ar"]:c["ar"] + 4, :c["Cout"]].set(aff)
    p_slab = p_slab.at[meta["dw_row"], :64].set(params["dense_w"].reshape(64))
    p_slab = p_slab.at[meta["db_row"], 0].set(params["dense_b"][0])
    return w_slab.astype(jnp.bfloat16), p_slab        # weights cast to bf16 once


# --------------------------------------------------------------------------
# Fused forward kernel
# --------------------------------------------------------------------------
def _disc_kernel(x_ref, w_ref, p_ref, out_ref,
                 lhs1, lhs2, lhs3, lhs4, act2, act3, act4,
                 *, batch, dims, head, dw_row, db_row):
    d1, d2, d3, d4 = dims
    f32 = jnp.float32

    # --- zero ONLY the padding rows of each activation scratch, once per call ---
    def zero_pads(act, d):
        for b in range(batch):
            base = b * d["Wp"]
            if d["pad_left"] > 0:
                act[base:base + d["pad_left"], :] = jnp.zeros(
                    (d["pad_left"], d["Cin"]), f32)
            rpad = d["Wp_read"] - d["pad_left"] - d["W"]
            if rpad > 0:
                r0 = base + d["pad_left"] + d["W"]
                act[r0:r0 + rpad, :] = jnp.zeros((rpad, d["Cin"]), f32)

    zero_pads(act2, d2)
    zero_pads(act3, d3)
    if not head:
        zero_pads(act4, d4)                            # act4 only read on generic path

    # --- fused (value|gate) conv: assemble (B*Wo, kw*Cin) LHS, one bf16 dot ---
    def conv(src, lhs, d):
        cin, wo, kw, sw = d["Cin"], d["Wo"], d["kw"], d["sw"]
        for b in range(batch):                         # memory ops only (no MXU)
            base = b * d["Wp"]
            for j in range(kw):
                lhs[b * wo:(b + 1) * wo, j * cin:(j + 1) * cin] = \
                    src[pl.ds(base + j, wo, stride=sw), :]
        w = w_ref[d["wr"]:d["wr"] + kw * cin, :2 * d["Cout"]]            # bf16
        bias = p_ref[d["br"]:d["br"] + 1, :2 * d["Cout"]]                # f32
        acc = jnp.dot(lhs[...].astype(jnp.bfloat16), w,                  # one MXU op
                      preferred_element_type=f32)
        return acc + bias                              # (B*Wo, 2*Cout) f32

    def inorm(v, g, b):
        m = jnp.mean(v, axis=0, keepdims=True)
        c = v - m
        var = jnp.mean(c * c, axis=0, keepdims=True)
        return c * jax.lax.rsqrt(var + 1e-5) * g + b

    def block(src, lhs, d, dst, dst_d):
        a = conv(src, lhs, d)
        C = d["Cout"]
        gam = p_ref[d["ar"] + 0:d["ar"] + 1, :C]       # hoisted out of sample loop
        bet = p_ref[d["ar"] + 1:d["ar"] + 2, :C]
        gamg = p_ref[d["ar"] + 2:d["ar"] + 3, :C]
        betg = p_ref[d["ar"] + 3:d["ar"] + 4, :C]
        outs = []
        for b in range(batch):                         # per-sample IN + GLU (f32, VPU)
            seg = a[b * d["Wo"]:(b + 1) * d["Wo"], :]
            h = inorm(seg[:, :C], gam, bet)
            g = inorm(seg[:, C:], gamg, betg)
            o = h * jax.nn.sigmoid(g)                  # (Wo, Cout) f32
            if dst is not None:
                r0 = b * dst_d["Wp"] + dst_d["pad_left"]
                dst[r0:r0 + d["Wo"], :] = o
            else:
                outs.append(o)
        return outs

    # Layer 1: fused conv -> LeakyReLU(0.2) -> GLU (no InstanceNorm), batched.
    a = conv(x_ref, lhs1, d1)
    a = jnp.where(a > 0, a, 0.2 * a)
    C1 = d1["Cout"]
    v = a[:, :C1] * jax.nn.sigmoid(a[:, C1:])          # (B*Wo1, 16) f32
    for b in range(batch):
        r0 = b * d2["Wp"] + d2["pad_left"]
        act2[r0:r0 + d1["Wo"], :] = v[b * d1["Wo"]:(b + 1) * d1["Wo"], :]

    block(act2, lhs2, d2, act3, d3)                    # downsample1
    block(act3, lhs3, d3, act4, d4)                    # downsample2

    if head:
        # d4["Wo"] == 1 (required by Linear(64,1)): InstanceNorm of a 1-wide map
        # is exactly beta -> skip block-4 conv/mean/var/rsqrt entirely and feed
        # beta * sigmoid(beta_gate) straight into the dense head (bit-identical).
        C4 = d4["Cout"]
        bet4 = p_ref[d4["ar"] + 1:d4["ar"] + 2, :C4]
        betg4 = p_ref[d4["ar"] + 3:d4["ar"] + 4, :C4]
        v4 = bet4 * jax.nn.sigmoid(betg4)                                # (1, 64)
        dw = p_ref[dw_row:dw_row + 1, :C4]
        db = p_ref[db_row:db_row + 1, 0:1]
        logit = jnp.sum(v4 * dw, axis=-1, keepdims=True) + db            # (1, 1)
        out_ref[...] = jnp.broadcast_to(jax.nn.sigmoid(logit), (batch, 1))
    else:
        feats = block(act4, lhs4, d4, None, None)      # generic downsample3
        for b in range(batch):
            out_ref[b] = feats[b]                      # (Wo4, 64) per sample


# --------------------------------------------------------------------------
# Host wrapper: single no-grid pallas_call, 3 coalesced operands
# --------------------------------------------------------------------------
def discriminator_forward(w_slab, p_slab, x, *, head=True):
    B, Cin, T = x.shape
    meta = _static_meta(Cin)
    dims, W = [], T
    for c in meta["layers"]:
        d = _conv_dims(c, W)
        dims.append(d)
        W = d["Wo"]
    d1, d4 = dims[0], dims[3]
    if head and d4["Wo"] != 1:
        raise ValueError("Linear(64, 1) head requires the final feature map to be 1-wide")

    # Host-side layout only (no im2col): transpose to channels-on-lanes, zero-pad
    # each sample's W axis and lay samples back-to-back in 8-row segments.
    xt = jnp.transpose(x, (0, 2, 1)).astype(jnp.float32)           # (B, T, Cin)
    xp = jnp.zeros((B, d1["Wp"], Cin), jnp.float32)
    xp = xp.at[:, d1["pad_left"]:d1["pad_left"] + T, :].set(xt)
    xp = xp.reshape(B * d1["Wp"], Cin)

    if head:
        out_shape = jax.ShapeDtypeStruct((B, 1), jnp.float32)
    else:
        out_shape = jax.ShapeDtypeStruct((B, d4["Wo"], d4["Cout"]), jnp.float32)

    scratch = (
        [pltpu.VMEM((B * d["Wo"], d["kw"] * d["Cin"]), jnp.float32) for d in dims]   # lhs1..4
        + [pltpu.VMEM((B * d["Wp"], d["Cin"]), jnp.float32) for d in dims[1:]]       # act2..4
    )

    kernel = functools.partial(_disc_kernel, batch=B, dims=tuple(dims), head=head,
                               dw_row=meta["dw_row"], db_row=meta["db_row"])

    # NOTE(v7x): at this batch size a single no-grid call is fastest; for larger
    # batches add a batch-parallel grid (dimension_semantics=("parallel",)) and
    # size W/batch tiles for 64 MiB VMEM (set vmem_limit_bytes explicitly).
    return pl.pallas_call(
        kernel,
        out_shape=out_shape,
        scratch_shapes=scratch,
    )(xp, w_slab, p_slab)


# --------------------------------------------------------------------------
# Parameters
# --------------------------------------------------------------------------
def init_params(key, inputs):
    keys = iter(jax.random.split(key, 32))

    def rnd(shape, scale=0.05):
        return scale * jax.random.normal(next(keys), shape, jnp.float32)

    def ds_block(cin, cout, kh, kw):
        return dict(
            w=rnd((cout, cin, kh, kw)), b=rnd((cout,), 0.01),
            wg=rnd((cout, cin, kh, kw)), bg=rnd((cout,), 0.01),
            gamma=1.0 + rnd((cout,), 0.1), beta=rnd((cout,), 0.1),
            gamma_g=1.0 + rnd((cout,), 0.1), beta_g=rnd((cout,), 0.1),
        )

    return dict(
        h1_w=rnd((16, inputs, 3, 3)), h1_b=rnd((16,), 0.01),
        h1g_w=rnd((16, inputs, 3, 3)), h1g_b=rnd((16,), 0.01),
        d1=ds_block(16, 32, 3, 3),
        d2=ds_block(32, 32, 3, 3),
        d3=ds_block(32, 64, 6, 3),
        dense_w=rnd((1, 64)), dense_b=rnd((1,), 0.01),
    )


# --------------------------------------------------------------------------
# Pure-XLA reference (full 2-D convs, identical bf16 matmul inputs)
# --------------------------------------------------------------------------
def _reference_d3(params, x):
    def conv_same(v, w, b, strides, act):
        _, _, H, W = v.shape
        _, _, kh, kw = w.shape
        sh, sw = strides
        Ho, Wo = -(-H // sh), -(-W // sw)
        ph = max((Ho - 1) * sh + kh - H, 0)
        pw = max((Wo - 1) * sw + kw - W, 0)
        vp = jnp.pad(v, ((0, 0), (0, 0),
                         (ph // 2, ph - ph // 2), (pw // 2, pw - pw // 2)))
        out = jax.lax.conv_general_dilated(
            vp.astype(jnp.bfloat16), w.astype(jnp.bfloat16),
            window_strides=(sh, sw), padding="VALID",
            dimension_numbers=("NCHW", "OIHW", "NCHW"),
            preferred_element_type=jnp.float32)
        out = out + b[None, :, None, None]
        if act:
            out = jnp.where(out > 0, out, 0.2 * out)
        return out

    def inorm(v, g, bta):
        m = jnp.mean(v, axis=(2, 3), keepdims=True)
        var = jnp.mean((v - m) ** 2, axis=(2, 3), keepdims=True)
        return ((v - m) * jax.lax.rsqrt(var + 1e-5) * g[None, :, None, None]
                + bta[None, :, None, None])

    def block(v, p, strides):
        c = conv_same(v, p["w"], p["b"], strides, False)
        g = conv_same(v, p["wg"], p["bg"], strides, False)
        return (inorm(c, p["gamma"], p["beta"])
                * jax.nn.sigmoid(inorm(g, p["gamma_g"], p["beta_g"])))

    v = x[:, :, None, :]
    h1 = conv_same(v, params["h1_w"], params["h1_b"], (1, 2), True)
    hg = conv_same(v, params["h1g_w"], params["h1g_b"], (1, 2), True)
    v = h1 * jax.nn.sigmoid(hg)
    v = block(v, params["d1"], (2, 2))
    v = block(v, params["d2"], (2, 2))
    v = block(v, params["d3"], (1, 2))
    return v                                                    # (B, 64, 1, Wo4)


def _reference_forward(params, x):
    d3 = _reference_d3(params, x)
    flat = d3.reshape(d3.shape[0], -1)
    logit = jnp.dot(flat, params["dense_w"].T,
                    precision=jax.lax.Precision.HIGHEST) + params["dense_b"][None, :]
    return jax.nn.sigmoid(logit)


# --------------------------------------------------------------------------
if __name__ == "__main__":
    key = jax.random.PRNGKey(0)
    pkey, xkey, xkey2 = jax.random.split(key, 3)

    inputs = 4      # module __init__ arg (input channel dim)
    B, T = 2, 16    # T=16 reduces to a (B, 64, 1, 1) map -> Linear(64, 1)

    params = init_params(pkey, inputs)
    w_slab, p_slab = pack_params(params, inputs)        # one-time repack (host/XLA)
    x = jax.random.normal(xkey, (B, inputs, T), jnp.float32)

    fwd = jax.jit(functools.partial(discriminator_forward, head=True))
    out = jax.block_until_ready(fwd(w_slab, p_slab, x))
    assert out.shape == (B, 1)
    assert bool(jnp.all(jnp.isfinite(out)))
    assert bool(jnp.all((out >= 0.0) & (out <= 1.0)))

    ref = jax.jit(_reference_forward)(params, x)
    err = float(jnp.max(jnp.abs(out - ref)))
    assert err < 5e-3, f"head mismatch vs reference: {err}"

    # At T=16 the output is provably independent of x (final InstanceNorm over a
    # 1-wide map collapses to beta), so additionally validate the whole conv /
    # InstanceNorm / GLU pipeline at T=32 where the last block's width is 2.
    T2 = 32
    x2 = jax.random.normal(xkey2, (B, inputs, T2), jnp.float32)
    feat_fn = jax.jit(functools.partial(discriminator_forward, head=False))
    feats = jax.block_until_ready(feat_fn(w_slab, p_slab, x2))      # (B, 2, 64)
    ref_feats = jnp.transpose(_reference_d3(params, x2)[:, :, 0, :], (0, 2, 1))
    ferr = float(jnp.max(jnp.abs(feats - ref_feats)))
    assert ferr < 1e-2, f"feature-map mismatch vs reference: {ferr}"

    print("KERNEL_OK")
</pallas_src>

<mosaic_0001>
module attributes {stable_mosaic.version = 11 : i64} {
  func.func @_disc_kernel(%arg0: memref<48x4xf32, #tpu.memory_space<vmem>>, %arg1: memref<256x128xbf16, #tpu.memory_space<vmem>>, %arg2: memref<24x128xf32, #tpu.memory_space<vmem>>, %arg3: memref<2x1xf32, #tpu.memory_space<vmem>>, %arg4: memref<16x12xf32, #tpu.memory_space<vmem>>, %arg5: memref<8x48xf32, #tpu.memory_space<vmem>>, %arg6: memref<4x96xf32, #tpu.memory_space<vmem>>, %arg7: memref<2x96xf32, #tpu.memory_space<vmem>>, %arg8: memref<32x16xf32, #tpu.memory_space<vmem>>, %arg9: memref<16x32xf32, #tpu.memory_space<vmem>>, %arg10: memref<16x32xf32, #tpu.memory_space<vmem>>) attributes {dimension_semantics = [], scalar_prefetch = 0 : i64, scratch_operands = 7 : i64, tpu.core_type = #tpu.core_type<tc>} {
    %cst = arith.constant 0.000000e+00 : f32
    %0 = vector.broadcast %cst : f32 to vector<1x16xf32>
    %c8 = arith.constant 8 : index
    %c0 = arith.constant 0 : index
    %1 = vector.load %arg8[%c8, %c0] : memref<32x16xf32, #tpu.memory_space<vmem>>, vector<1x16xf32>
    tpu.vector_store %arg8[%c8, %c0], %0 {strides = array<i32>} : memref<32x16xf32, #tpu.memory_space<vmem>>, vector<1x16xf32>,
    %cst_0 = arith.constant 0.000000e+00 : f32
    %2 = vector.broadcast %cst_0 : f32 to vector<1x16xf32>
    %c24 = arith.constant 24 : index
    %c0_1 = arith.constant 0 : index
    %3 = vector.load %arg8[%c24, %c0_1] : memref<32x16xf32, #tpu.memory_space<vmem>>, vector<1x16xf32>
    tpu.vector_store %arg8[%c24, %c0_1], %2 {strides = array<i32>} : memref<32x16xf32, #tpu.memory_space<vmem>>, vector<1x16xf32>,
    %cst_2 = arith.constant 0.000000e+00 : f32
    %4 = vector.broadcast %cst_2 : f32 to vector<1x32xf32>
    %c4 = arith.constant 4 : index
    %c0_3 = arith.constant 0 : index
    %5 = vector.load %arg9[%c4, %c0_3] : memref<16x32xf32, #tpu.memory_space<vmem>>, vector<1x32xf32>
    tpu.vector_store %arg9[%c4, %c0_3], %4 {strides = array<i32>} : memref<16x32xf32, #tpu.memory_space<vmem>>, vector<1x32xf32>,
    %cst_4 = arith.constant 0.000000e+00 : f32
    %6 = vector.broadcast %cst_4 : f32 to vector<1x32xf32>
    %c12 = arith.constant 12 : index
    %c0_5 = arith.constant 0 : index
    %7 = vector.load %arg9[%c12, %c0_5] : memref<16x32xf32, #tpu.memory_space<vmem>>, vector<1x32xf32>
    tpu.vector_store %arg9[%c12, %c0_5], %6 {strides = array<i32>} : memref<16x32xf32, #tpu.memory_space<vmem>>, vector<1x32xf32>,
    %c0_6 = arith.constant 0 : index
    %c0_7 = arith.constant 0 : index
    %8 = tpu.strided_load %arg0[%c0_6, %c0_7] {strides = array<i32: 2, 1>} : memref<48x4xf32, #tpu.memory_space<vmem>>, vector<8x4xf32>
    %c0_8 = arith.constant 0 : index
    %c0_9 = arith.constant 0 : index
    %9 = vector.load %arg4[%c0_8, %c0_9] : memref<16x12xf32, #tpu.memory_space<vmem>>, vector<8x4xf32>
    tpu.vector_store %arg4[%c0_8, %c0_9], %8 {strides = array<i32>} : memref<16x12xf32, #tpu.memory_space<vmem>>, vector<8x4xf32>,
    %c1 = arith.constant 1 : index
    %c0_10 = arith.constant 0 : index
    %10 = tpu.strided_load %arg0[%c1, %c0_10] {strides = array<i32: 2, 1>} : memref<48x4xf32, #tpu.memory_space<vmem>>, vector<8x4xf32>
    %c0_11 = arith.constant 0 : index
    %c4_12 = arith.constant 4 : index
    %11 = vector.load %arg4[%c0_11, %c4_12] : memref<16x12xf32, #tpu.memory_space<vmem>>, vector<8x4xf32>
    tpu.vector_store %arg4[%c0_11, %c4_12], %10 {strides = array<i32>} : memref<16x12xf32, #tpu.memory_space<vmem>>, vector<8x4xf32>,
    %c2 = arith.constant 2 : index
    %c0_13 = arith.constant 0 : index
    %12 = tpu.strided_load %arg0[%c2, %c0_13] {strides = array<i32: 2, 1>} : memref<48x4xf32, #tpu.memory_space<vmem>>, vector<8x4xf32>
    %c0_14 = arith.constant 0 : index
    %c8_15 = arith.constant 8 : index
    %13 = vector.load %arg4[%c0_14, %c8_15] : memref<16x12xf32, #tpu.memory_space<vmem>>, vector<8x4xf32>
    tpu.vector_store %arg4[%c0_14, %c8_15], %12 {strides = array<i32>} : memref<16x12xf32, #tpu.memory_space<vmem>>, vector<8x4xf32>,
    %c24_16 = arith.constant 24 : index
    %c0_17 = arith.constant 0 : index
    %14 = tpu.strided_load %arg0[%c24_16, %c0_17] {strides = array<i32: 2, 1>} : memref<48x4xf32, #tpu.memory_space<vmem>>, vector<8x4xf32>
    %c8_18 = arith.constant 8 : index
    %c0_19 = arith.constant 0 : index
    %15 = vector.load %arg4[%c8_18, %c0_19] : memref<16x12xf32, #tpu.memory_space<vmem>>, vector<8x4xf32>
    tpu.vector_store %arg4[%c8_18, %c0_19], %14 {strides = array<i32>} : memref<16x12xf32, #tpu.memory_space<vmem>>, vector<8x4xf32>,
    %c25 = arith.constant 25 : index
    %c0_20 = arith.constant 0 : index
    %16 = tpu.strided_load %arg0[%c25, %c0_20] {strides = array<i32: 2, 1>} : memref<48x4xf32, #tpu.memory_space<vmem>>, vector<8x4xf32>
    %c8_21 = arith.constant 8 : index
    %c4_22 = arith.constant 4 : index
    %17 = vector.load %arg4[%c8_21, %c4_22] : memref<16x12xf32, #tpu.memory_space<vmem>>, vector<8x4xf32>
    tpu.vector_store %arg4[%c8_21, %c4_22], %16 {strides = array<i32>} : memref<16x12xf32, #tpu.memory_space<vmem>>, vector<8x4xf32>,
    %c26 = arith.constant 26 : index
    %c0_23 = arith.constant 0 : index
    %18 = tpu.strided_load %arg0[%c26, %c0_23] {strides = array<i32: 2, 1>} : memref<48x4xf32, #tpu.memory_space<vmem>>, vector<8x4xf32>
    %c8_24 = arith.constant 8 : index
    %c8_25 = arith.constant 8 : index
    %19 = vector.load %arg4[%c8_24, %c8_25] : memref<16x12xf32, #tpu.memory_space<vmem>>, vector<8x4xf32>
    tpu.vector_store %arg4[%c8_24, %c8_25], %18 {strides = array<i32>} : memref<16x12xf32, #tpu.memory_space<vmem>>, vector<8x4xf32>,
    %c0_26 = arith.constant 0 : index
    %c0_27 = arith.constant 0 : index
    %20 = vector.load %arg1[%c0_26, %c0_27] : memref<256x128xbf16, #tpu.memory_space<vmem>>, vector<12x32xbf16>
    %c0_28 = arith.constant 0 : index
    %c0_29 = arith.constant 0 : index
    %21 = vector.load %arg2[%c0_28, %c0_29] : memref<24x128xf32, #tpu.memory_space<vmem>>, vector<1x32xf32>
    %c0_30 = arith.constant 0 : index
    %c0_31 = arith.constant 0 : index
    %22 = vector.load %arg4[%c0_30, %c0_31] : memref<16x12xf32, #tpu.memory_space<vmem>>, vector<16x12xf32>
    %23 = arith.truncf %22 : vector<16x12xf32> to vector<16x12xbf16>
    %cst_32 = arith.constant dense<0.000000e+00> : vector<16x32xf32>
    %24 = tpu.matmul %23, %20, %cst_32 {dimension_numbers = #tpu.dot_dimension_numbers<[1], [0], [0], [1], [0, 0, 1, 1], [], []>} : vector<16x12xbf16>, vector<12x32xbf16>, vector<16x32xf32> -> vector<16x32xf32>
    %25 = vector.broadcast %21 : vector<1x32xf32> to vector<16x32xf32>
    %26 = arith.addf %24, %25 : vector<16x32xf32>
    %cst_33 = arith.constant 0.000000e+00 : f32
    %27 = vector.broadcast %cst_33 : f32 to vector<16x32xf32>
    %28 = arith.cmpf ogt, %26, %27 : vector<16x32xf32>
    %cst_34 = arith.constant 2.000000e-01 : f32
    %29 = vector.broadcast %cst_34 : f32 to vector<16x32xf32>
    %30 = arith.mulf %29, %26 : vector<16x32xf32>
    %31 = arith.select %28, %26, %30 : vector<16x32xi1>, vector<16x32xf32>
    %32 = vector.extract_strided_slice %31 {offsets = [0, 0], sizes = [16, 16], strides = [1, 1]} : vector<16x32xf32> to vector<16x16xf32>
    %33 = vector.extract_strided_slice %31 {offsets = [0, 16], sizes = [16, 16], strides = [1, 1]} : vector<16x32xf32> to vector<16x16xf32>
    %34 = arith.negf %33 : vector<16x16xf32>
    %35 = math.exp %34 : vector<16x16xf32>
    %cst_35 = arith.constant 1.000000e+00 : f32
    %36 = vector.broadcast %cst_35 : f32 to vector<16x16xf32>
    %37 = arith.addf %36, %35 : vector<16x16xf32>
    %38 = arith.divf %36, %37 : vector<16x16xf32>
    %39 = arith.mulf %32, %38 : vector<16x16xf32>
    %40 = vector.extract_strided_slice %39 {offsets = [0, 0], sizes = [8, 16], strides = [1, 1]} : vector<16x16xf32> to vector<8x16xf32>
    %c0_36 = arith.constant 0 : index
    %c0_37 = arith.constant 0 : index
    %41 = vector.load %arg8[%c0_36, %c0_37] : memref<32x16xf32, #tpu.memory_space<vmem>>, vector<8x16xf32>
    tpu.vector_store %arg8[%c0_36, %c0_37], %40 {strides = array<i32>} : memref<32x16xf32, #tpu.memory_space<vmem>>, vector<8x16xf32>,
    %42 = vector.extract_strided_slice %39 {offsets = [8, 0], sizes = [8, 16], strides = [1, 1]} : vector<16x16xf32> to vector<8x16xf32>
    %c16 = arith.constant 16 : index
    %c0_38 = arith.constant 0 : index
    %43 = vector.load %arg8[%c16, %c0_38] : memref<32x16xf32, #tpu.memory_space<vmem>>, vector<8x16xf32>
    tpu.vector_store %arg8[%c16, %c0_38], %42 {strides = array<i32>} : memref<32x16xf32, #tpu.memory_space<vmem>>, vector<8x16xf32>,
    %c0_39 = arith.constant 0 : index
    %c0_40 = arith.constant 0 : index
    %44 = tpu.strided_load %arg8[%c0_39, %c0_40] {strides = array<i32: 2, 1>} : memref<32x16xf32, #tpu.memory_space<vmem>>, vector<4x16xf32>
    %c0_41 = arith.constant 0 : index
    %c0_42 = arith.constant 0 : index
    %45 = vector.load %arg5[%c0_41, %c0_42] : memref<8x48xf32, #tpu.memory_space<vmem>>, vector<4x16xf32>
    tpu.vector_store %arg5[%c0_41, %c0_42], %44 {strides = array<i32>} : memref<8x48xf32, #tpu.memory_space<vmem>>, vector<4x16xf32>,
    %c1_43 = arith.constant 1 : index
    %c0_44 = arith.constant 0 : index
    %46 = tpu.strided_load %arg8[%c1_43, %c0_44] {strides = array<i32: 2, 1>} : memref<32x16xf32, #tpu.memory_space<vmem>>, vector<4x16xf32>
    %c0_45 = arith.constant 0 : index
    %c16_46 = arith.constant 16 : index
    %47 = vector.load %arg5[%c0_45, %c16_46] : memref<8x48xf32, #tpu.memory_space<vmem>>, vector<4x16xf32>
    tpu.vector_store %arg5[%c0_45, %c16_46], %46 {strides = array<i32>} : memref<8x48xf32, #tpu.memory_space<vmem>>, vector<4x16xf32>,
    %c2_47 = arith.constant 2 : index
    %c0_48 = arith.constant 0 : index
    %48 = tpu.strided_load %arg8[%c2_47, %c0_48] {strides = array<i32: 2, 1>} : memref<32x16xf32, #tpu.memory_space<vmem>>, vector<4x16xf32>
    %c0_49 = arith.constant 0 : index
    %c32 = arith.constant 32 : index
    %49 = vector.load %arg5[%c0_49, %c32] : memref<8x48xf32, #tpu.memory_space<vmem>>, vector<4x16xf32>
    tpu.vector_store %arg5[%c0_49, %c32], %48 {strides = array<i32>} : memref<8x48xf32, #tpu.memory_space<vmem>>, vector<4x16xf32>,
    %c16_50 = arith.constant 16 : index
    %c0_51 = arith.constant 0 : index
    %50 = tpu.strided_load %arg8[%c16_50, %c0_51] {strides = array<i32: 2, 1>} : memref<32x16xf32, #tpu.memory_space<vmem>>, vector<4x16xf32>
    %c4_52 = arith.constant 4 : index
    %c0_53 = arith.constant 0 : index
    %51 = vector.load %arg5[%c4_52, %c0_53] : memref<8x48xf32, #tpu.memory_space<vmem>>, vector<4x16xf32>
    tpu.vector_store %arg5[%c4_52, %c0_53], %50 {strides = array<i32>} : memref<8x48xf32, #tpu.memory_space<vmem>>, vector<4x16xf32>,
    %c17 = arith.constant 17 : index
    %c0_54 = arith.constant 0 : index
    %52 = tpu.strided_load %arg8[%c17, %c0_54] {strides = array<i32: 2, 1>} : memref<32x16xf32, #tpu.memory_space<vmem>>, vector<4x16xf32>
    %c4_55 = arith.constant 4 : index
    %c16_56 = arith.constant 16 : index
    %53 = vector.load %arg5[%c4_55, %c16_56] : memref<8x48xf32, #tpu.memory_space<vmem>>, vector<4x16xf32>
    tpu.vector_store %arg5[%c4_55, %c16_56], %52 {strides = array<i32>} : memref<8x48xf32, #tpu.memory_space<vmem>>, vector<4x16xf32>,
    %c18 = arith.constant 18 : index
    %c0_57 = arith.constant 0 : index
    %54 = tpu.strided_load %arg8[%c18, %c0_57] {strides = array<i32: 2, 1>} : memref<32x16xf32, #tpu.memory_space<vmem>>, vector<4x16xf32>
    %c4_58 = arith.constant 4 : index
    %c32_59 = arith.constant 32 : index
    %55 = vector.load %arg5[%c4_58, %c32_59] : memref<8x48xf32, #tpu.memory_space<vmem>>, vector<4x16xf32>
    tpu.vector_store %arg5[%c4_58, %c32_59], %54 {strides = array<i32>} : memref<8x48xf32, #tpu.memory_space<vmem>>, vector<4x16xf32>,
    %c16_60 = arith.constant 16 : index
    %c0_61 = arith.constant 0 : index
    %56 = vector.load %arg1[%c16_60, %c0_61] : memref<256x128xbf16, #tpu.memory_space<vmem>>, vector<48x64xbf16>
    %c1_62 = arith.constant 1 : index
    %c0_63 = arith.constant 0 : index
    %57 = vector.load %arg2[%c1_62, %c0_63] : memref<24x128xf32, #tpu.memory_space<vmem>>, vector<1x64xf32>
    %c0_64 = arith.constant 0 : index
    %c0_65 = arith.constant 0 : index
    %58 = vector.load %arg5[%c0_64, %c0_65] : memref<8x48xf32, #tpu.memory_space<vmem>>, vector<8x48xf32>
    %59 = arith.truncf %58 : vector<8x48xf32> to vector<8x48xbf16>
    %cst_66 = arith.constant dense<0.000000e+00> : vector<8x64xf32>
    %60 = tpu.matmul %59, %56, %cst_66 {dimension_numbers = #tpu.dot_dimension_numbers<[1], [0], [0], [1], [0, 0, 1, 1], [], []>} : vector<8x48xbf16>, vector<48x64xbf16>, vector<8x64xf32> -> vector<8x64xf32>
    %61 = vector.broadcast %57 : vector<1x64xf32> to vector<8x64xf32>
    %62 = arith.addf %60, %61 : vector<8x64xf32>
    %c4_67 = arith.constant 4 : index
    %c0_68 = arith.constant 0 : index
    %63 = vector.load %arg2[%c4_67, %c0_68] : memref<24x128xf32, #tpu.memory_space<vmem>>, vector<1x32xf32>
    %c5 = arith.constant 5 : index
    %c0_69 = arith.constant 0 : index
    %64 = vector.load %arg2[%c5, %c0_69] : memref<24x128xf32, #tpu.memory_space<vmem>>, vector<1x32xf32>
    %c6 = arith.constant 6 : index
    %c0_70 = arith.constant 0 : index
    %65 = vector.load %arg2[%c6, %c0_70] : memref<24x128xf32, #tpu.memory_space<vmem>>, vector<1x32xf32>
    %c7 = arith.constant 7 : index
    %c0_71 = arith.constant 0 : index
    %66 = vector.load %arg2[%c7, %c0_71] : memref<24x128xf32, #tpu.memory_space<vmem>>, vector<1x32xf32>
    %67 = vector.extract_strided_slice %62 {offsets = [0, 0], sizes = [4, 64], strides = [1, 1]} : vector<8x64xf32> to vector<4x64xf32>
    %68 = vector.extract_strided_slice %67 {offsets = [0, 0], sizes = [4, 32], strides = [1, 1]} : vector<4x64xf32> to vector<4x32xf32>
    %cst_72 = arith.constant dense<0.000000e+00> : vector<32xf32>
    %69 = vector.multi_reduction <add>, %68, %cst_72 [0] : vector<4x32xf32> to vector<32xf32>
    %70 = vector.shape_cast %69 : vector<32xf32> to vector<1x32xf32>
    %cst_73 = arith.constant 4.000000e+00 : f32
    %71 = vector.broadcast %cst_73 : f32 to vector<1x32xf32>
    %72 = arith.divf %70, %71 : vector<1x32xf32>
    %73 = vector.broadcast %72 : vector<1x32xf32> to vector<4x32xf32>
    %74 = arith.subf %68, %73 : vector<4x32xf32>
    %75 = arith.mulf %74, %74 : vector<4x32xf32>
    %cst_74 = arith.constant dense<0.000000e+00> : vector<32xf32>
    %76 = vector.multi_reduction <add>, %75, %cst_74 [0] : vector<4x32xf32> to vector<32xf32>
    %77 = vector.shape_cast %76 : vector<32xf32> to vector<1x32xf32>
    %cst_75 = arith.constant 4.000000e+00 : f32
    %78 = vector.broadcast %cst_75 : f32 to vector<1x32xf32>
    %79 = arith.divf %77, %78 : vector<1x32xf32>
    %cst_76 = arith.constant 9.99999974E-6 : f32
    %80 = vector.broadcast %cst_76 : f32 to vector<1x32xf32>
    %81 = arith.addf %79, %80 : vector<1x32xf32>
    %82 = math.rsqrt %81 : vector<1x32xf32>
    %83 = vector.broadcast %82 : vector<1x32xf32> to vector<4x32xf32>
    %84 = arith.mulf %74, %83 : vector<4x32xf32>
    %85 = vector.broadcast %63 : vector<1x32xf32> to vector<4x32xf32>
    %86 = arith.mulf %84, %85 : vector<4x32xf32>
    %87 = vector.broadcast %64 : vector<1x32xf32> to vector<4x32xf32>
    %88 = arith.addf %86, %87 : vector<4x32xf32>
    %89 = vector.extract_strided_slice %67 {offsets = [0, 32], sizes = [4, 32], strides = [1, 1]} : vector<4x64xf32> to vector<4x32xf32>
    %cst_77 = arith.constant dense<0.000000e+00> : vector<32xf32>
    %90 = vector.multi_reduction <add>, %89, %cst_77 [0] : vector<4x32xf32> to vector<32xf32>
    %91 = vector.shape_cast %90 : vector<32xf32> to vector<1x32xf32>
    %cst_78 = arith.constant 4.000000e+00 : f32
    %92 = vector.broadcast %cst_78 : f32 to vector<1x32xf32>
    %93 = arith.divf %91, %92 : vector<1x32xf32>
    %94 = vector.broadcast %93 : vector<1x32xf32> to vector<4x32xf32>
    %95 = arith.subf %89, %94 : vector<4x32xf32>
    %96 = arith.mulf %95, %95 : vector<4x32xf32>
    %cst_79 = arith.constant dense<0.000000e+00> : vector<32xf32>
    %97 = vector.multi_reduction <add>, %96, %cst_79 [0] : vector<4x32xf32> to vector<32xf32>
    %98 = vector.shape_cast %97 : vector<32xf32> to vector<1x32xf32>
    %cst_80 = arith.constant 4.000000e+00 : f32
    %99 = vector.broadcast %cst_80 : f32 to vector<1x32xf32>
    %100 = arith.divf %98, %99 : vector<1x32xf32>
    %cst_81 = arith.constant 9.99999974E-6 : f32
    %101 = vector.broadcast %cst_81 : f32 to vector<1x32xf32>
    %102 = arith.addf %100, %101 : vector<1x32xf32>
    %103 = math.rsqrt %102 : vector<1x32xf32>
    %104 = vector.broadcast %103 : vector<1x32xf32> to vector<4x32xf32>
    %105 = arith.mulf %95, %104 : vector<4x32xf32>
    %106 = vector.broadcast %65 : vector<1x32xf32> to vector<4x32xf32>
    %107 = arith.mulf %105, %106 : vector<4x32xf32>
    %108 = vector.broadcast %66 : vector<1x32xf32> to vector<4x32xf32>
    %109 = arith.addf %107, %108 : vector<4x32xf32>
    %110 = arith.negf %109 : vector<4x32xf32>
    %111 = math.exp %110 : vector<4x32xf32>
    %cst_82 = arith.constant 1.000000e+00 : f32
    %112 = vector.broadcast %cst_82 : f32 to vector<4x32xf32>
    %113 = arith.addf %112, %111 : vector<4x32xf32>
    %114 = arith.divf %112, %113 : vector<4x32xf32>
    %115 = arith.mulf %88, %114 : vector<4x32xf32>
    %c0_83 = arith.constant 0 : index
    %c0_84 = arith.constant 0 : index
    %116 = vector.load %arg9[%c0_83, %c0_84] : memref<16x32xf32, #tpu.memory_space<vmem>>, vector<4x32xf32>
    tpu.vector_store %arg9[%c0_83, %c0_84], %115 {strides = array<i32>} : memref<16x32xf32, #tpu.memory_space<vmem>>, vector<4x32xf32>,
    %117 = vector.extract_strided_slice %62 {offsets = [4, 0], sizes = [4, 64], strides = [1, 1]} : vector<8x64xf32> to vector<4x64xf32>
    %118 = vector.extract_strided_slice %117 {offsets = [0, 0], sizes = [4, 32], strides = [1, 1]} : vector<4x64xf32> to vector<4x32xf32>
    %cst_85 = arith.constant dense<0.000000e+00> : vector<32xf32>
    %119 = vector.multi_reduction <add>, %118, %cst_85 [0] : vector<4x32xf32> to vector<32xf32>
    %120 = vector.shape_cast %119 : vector<32xf32> to vector<1x32xf32>
    %cst_86 = arith.constant 4.000000e+00 : f32
    %121 = vector.broadcast %cst_86 : f32 to vector<1x32xf32>
    %122 = arith.divf %120, %121 : vector<1x32xf32>
    %123 = vector.broadcast %122 : vector<1x32xf32> to vector<4x32xf32>
    %124 = arith.subf %118, %123 : vector<4x32xf32>
    %125 = arith.mulf %124, %124 : vector<4x32xf32>
    %cst_87 = arith.constant dense<0.000000e+00> : vector<32xf32>
    %126 = vector.multi_reduction <add>, %125, %cst_87 [0] : vector<4x32xf32> to vector<32xf32>
    %127 = vector.shape_cast %126 : vector<32xf32> to vector<1x32xf32>
    %cst_88 = arith.constant 4.000000e+00 : f32
    %128 = vector.broadcast %cst_88 : f32 to vector<1x32xf32>
    %129 = arith.divf %127, %128 : vector<1x32xf32>
    %cst_89 = arith.constant 9.99999974E-6 : f32
    %130 = vector.broadcast %cst_89 : f32 to vector<1x32xf32>
    %131 = arith.addf %129, %130 : vector<1x32xf32>
    %132 = math.rsqrt %131 : vector<1x32xf32>
    %133 = vector.broadcast %132 : vector<1x32xf32> to vector<4x32xf32>
    %134 = arith.mulf %124, %133 : vector<4x32xf32>
    %135 = vector.broadcast %63 : vector<1x32xf32> to vector<4x32xf32>
    %136 = arith.mulf %134, %135 : vector<4x32xf32>
    %137 = vector.broadcast %64 : vector<1x32xf32> to vector<4x32xf32>
    %138 = arith.addf %136, %137 : vector<4x32xf32>
    %139 = vector.extract_strided_slice %117 {offsets = [0, 32], sizes = [4, 32], strides = [1, 1]} : vector<4x64xf32> to vector<4x32xf32>
    %cst_90 = arith.constant dense<0.000000e+00> : vector<32xf32>
    %140 = vector.multi_reduction <add>, %139, %cst_90 [0] : vector<4x32xf32> to vector<32xf32>
    %141 = vector.shape_cast %140 : vector<32xf32> to vector<1x32xf32>
    %cst_91 = arith.constant 4.000000e+00 : f32
    %142 = vector.broadcast %cst_91 : f32 to vector<1x32xf32>
    %143 = arith.divf %141, %142 : vector<1x32xf32>
    %144 = vector.broadcast %143 : vector<1x32xf32> to vector<4x32xf32>
    %145 = arith.subf %139, %144 : vector<4x32xf32>
    %146 = arith.mulf %145, %145 : vector<4x32xf32>
    %cst_92 = arith.constant dense<0.000000e+00> : vector<32xf32>
    %147 = vector.multi_reduction <add>, %146, %cst_92 [0] : vector<4x32xf32> to vector<32xf32>
    %148 = vector.shape_cast %147 : vector<32xf32> to vector<1x32xf32>
    %cst_93 = arith.constant 4.000000e+00 : f32
    %149 = vector.broadcast %cst_93 : f32 to vector<1x32xf32>
    %150 = arith.divf %148, %149 : vector<1x32xf32>
    %cst_94 = arith.constant 9.99999974E-6 : f32
    %151 = vector.broadcast %cst_94 : f32 to vector<1x32xf32>
    %152 = arith.addf %150, %151 : vector<1x32xf32>
    %153 = math.rsqrt %152 : vector<1x32xf32>
    %154 = vector.broadcast %153 : vector<1x32xf32> to vector<4x32xf32>
    %155 = arith.mulf %145, %154 : vector<4x32xf32>
    %156 = vector.broadcast %65 : vector<1x32xf32> to vector<4x32xf32>
    %157 = arith.mulf %155, %156 : vector<4x32xf32>
    %158 = vector.broadcast %66 : vector<1x32xf32> to vector<4x32xf32>
    %159 = arith.addf %157, %158 : vector<4x32xf32>
    %160 = arith.negf %159 : vector<4x32xf32>
    %161 = math.exp %160 : vector<4x32xf32>
    %cst_95 = arith.constant 1.000000e+00 : f32
    %162 = vector.broadcast %cst_95 : f32 to vector<4x32xf32>
    %163 = arith.addf %162, %161 : vector<4x32xf32>
    %164 = arith.divf %162, %163 : vector<4x32xf32>
    %165 = arith.mulf %138, %164 : vector<4x32xf32>
    %c8_96 = arith.constant 8 : index
    %c0_97 = arith.constant 0 : index
    %166 = vector.load %arg9[%c8_96, %c0_97] : memref<16x32xf32, #tpu.memory_space<vmem>>, vector<4x32xf32>
    tpu.vector_store %arg9[%c8_96, %c0_97], %165 {strides = array<i32>} : memref<16x32xf32, #tpu.memory_space<vmem>>, vector<4x32xf32>,
    %c0_98 = arith.constant 0 : index
    %c0_99 = arith.constant 0 : index
    %167 = tpu.strided_load %arg9[%c0_98, %c0_99] {strides = array<i32: 2, 1>} : memref<16x32xf32, #tpu.memory_space<vmem>>, vector<2x32xf32>
    %c0_100 = arith.constant 0 : index
    %c0_101 = arith.constant 0 : index
    %168 = vector.load %arg6[%c0_100, %c0_101] : memref<4x96xf32, #tpu.memory_space<vmem>>, vector<2x32xf32>
    tpu.vector_store %arg6[%c0_100, %c0_101], %167 {strides = array<i32>} : memref<4x96xf32, #tpu.memory_space<vmem>>, vector<2x32xf32>,
    %c1_102 = arith.constant 1 : index
    %c0_103 = arith.constant 0 : index
    %169 = tpu.strided_load %arg9[%c1_102, %c0_103] {strides = array<i32: 2, 1>} : memref<16x32xf32, #tpu.memory_space<vmem>>, vector<2x32xf32>
    %c0_104 = arith.constant 0 : index
    %c32_105 = arith.constant 32 : index
    %170 = vector.load %arg6[%c0_104, %c32_105] : memref<4x96xf32, #tpu.memory_space<vmem>>, vector<2x32xf32>
    tpu.vector_store %arg6[%c0_104, %c32_105], %169 {strides = array<i32>} : memref<4x96xf32, #tpu.memory_space<vmem>>, vector<2x32xf32>,
    %c2_106 = arith.constant 2 : index
    %c0_107 = arith.constant 0 : index
    %171 = tpu.strided_load %arg9[%c2_106, %c0_107] {strides = array<i32: 2, 1>} : memref<16x32xf32, #tpu.memory_space<vmem>>, vector<2x32xf32>
    %c0_108 = arith.constant 0 : index
    %c64 = arith.constant 64 : index
    %172 = vector.load %arg6[%c0_108, %c64] : memref<4x96xf32, #tpu.memory_space<vmem>>, vector<2x32xf32>
    tpu.vector_store %arg6[%c0_108, %c64], %171 {strides = array<i32>} : memref<4x96xf32, #tpu.memory_space<vmem>>, vector<2x32xf32>,
    %c8_109 = arith.constant 8 : index
    %c0_110 = arith.constant 0 : index
    %173 = tpu.strided_load %arg9[%c8_109, %c0_110] {strides = array<i32: 2, 1>} : memref<16x32xf32, #tpu.memory_space<vmem>>, vector<2x32xf32>
    %c2_111 = arith.constant 2 : index
    %c0_112 = arith.constant 0 : index
    %174 = vector.load %arg6[%c2_111, %c0_112] : memref<4x96xf32, #tpu.memory_space<vmem>>, vector<2x32xf32>
    tpu.vector_store %arg6[%c2_111, %c0_112], %173 {strides = array<i32>} : memref<4x96xf32, #tpu.memory_space<vmem>>, vector<2x32xf32>,
    %c9 = arith.constant 9 : index
    %c0_113 = arith.constant 0 : index
    %175 = tpu.strided_load %arg9[%c9, %c0_113] {strides = array<i32: 2, 1>} : memref<16x32xf32, #tpu.memory_space<vmem>>, vector<2x32xf32>
    %c2_114 = arith.constant 2 : index
    %c32_115 = arith.constant 32 : index
    %176 = vector.load %arg6[%c2_114, %c32_115] : memref<4x96xf32, #tpu.memory_space<vmem>>, vector<2x32xf32>
    tpu.vector_store %arg6[%c2_114, %c32_115], %175 {strides = array<i32>} : memref<4x96xf32, #tpu.memory_space<vmem>>, vector<2x32xf32>,
    %c10 = arith.constant 10 : index
    %c0_116 = arith.constant 0 : index
    %177 = tpu.strided_load %arg9[%c10, %c0_116] {strides = array<i32: 2, 1>} : memref<16x32xf32, #tpu.memory_space<vmem>>, vector<2x32xf32>
    %c2_117 = arith.constant 2 : index
    %c64_118 = arith.constant 64 : index
    %178 = vector.load %arg6[%c2_117, %c64_118] : memref<4x96xf32, #tpu.memory_space<vmem>>, vector<2x32xf32>
    tpu.vector_store %arg6[%c2_117, %c64_118], %177 {strides = array<i32>} : memref<4x96xf32, #tpu.memory_space<vmem>>, vector<2x32xf32>,
    %c64_119 = arith.constant 64 : index
    %c0_120 = arith.constant 0 : index
    %179 = vector.load %arg1[%c64_119, %c0_120] : memref<256x128xbf16, #tpu.memory_space<vmem>>, vector<96x64xbf16>
    %c2_121 = arith.constant 2 : index
    %c0_122 = arith.constant 0 : index
    %180 = vector.load %arg2[%c2_121, %c0_122] : memref<24x128xf32, #tpu.memory_space<vmem>>, vector<1x64xf32>
    %c0_123 = arith.constant 0 : index
    %c0_124 = arith.constant 0 : index
    %181 = vector.load %arg6[%c0_123, %c0_124] : memref<4x96xf32, #tpu.memory_space<vmem>>, vector<4x96xf32>
    %182 = arith.truncf %181 : vector<4x96xf32> to vector<4x96xbf16>
    %cst_125 = arith.constant dense<0.000000e+00> : vector<4x64xf32>
    %183 = tpu.matmul %182, %179, %cst_125 {dimension_numbers = #tpu.dot_dimension_numbers<[1], [0], [0], [1], [0, 0, 1, 1], [], []>} : vector<4x96xbf16>, vector<96x64xbf16>, vector<4x64xf32> -> vector<4x64xf32>
    %184 = vector.broadcast %180 : vector<1x64xf32> to vector<4x64xf32>
    %185 = arith.addf %183, %184 : vector<4x64xf32>
    %c8_126 = arith.constant 8 : index
    %c0_127 = arith.constant 0 : index
    %186 = vector.load %arg2[%c8_126, %c0_127] : memref<24x128xf32, #tpu.memory_space<vmem>>, vector<1x32xf32>
    %c9_128 = arith.constant 9 : index
    %c0_129 = arith.constant 0 : index
    %187 = vector.load %arg2[%c9_128, %c0_129] : memref<24x128xf32, #tpu.memory_space<vmem>>, vector<1x32xf32>
    %c10_130 = arith.constant 10 : index
    %c0_131 = arith.constant 0 : index
    %188 = vector.load %arg2[%c10_130, %c0_131] : memref<24x128xf32, #tpu.memory_space<vmem>>, vector<1x32xf32>
    %c11 = arith.constant 11 : index
    %c0_132 = arith.constant 0 : index
    %189 = vector.load %arg2[%c11, %c0_132] : memref<24x128xf32, #tpu.memory_space<vmem>>, vector<1x32xf32>
    %190 = vector.extract_strided_slice %185 {offsets = [0, 0], sizes = [2, 64], strides = [1, 1]} : vector<4x64xf32> to vector<2x64xf32>
    %191 = vector.extract_strided_slice %190 {offsets = [0, 0], sizes = [2, 32], strides = [1, 1]} : vector<2x64xf32> to vector<2x32xf32>
    %cst_133 = arith.constant dense<0.000000e+00> : vector<32xf32>
    %192 = vector.multi_reduction <add>, %191, %cst_133 [0] : vector<2x32xf32> to vector<32xf32>
    %193 = vector.shape_cast %192 : vector<32xf32> to vector<1x32xf32>
    %cst_134 = arith.constant 2.000000e+00 : f32
    %194 = vector.broadcast %cst_134 : f32 to vector<1x32xf32>
    %195 = arith.divf %193, %194 : vector<1x32xf32>
    %196 = vector.broadcast %195 : vector<1x32xf32> to vector<2x32xf32>
    %197 = arith.subf %191, %196 : vector<2x32xf32>
    %198 = arith.mulf %197, %197 : vector<2x32xf32>
    %cst_135 = arith.constant dense<0.000000e+00> : vector<32xf32>
    %199 = vector.multi_reduction <add>, %198, %cst_135 [0] : vector<2x32xf32> to vector<32xf32>
    %200 = vector.shape_cast %199 : vector<32xf32> to vector<1x32xf32>
    %cst_136 = arith.constant 2.000000e+00 : f32
    %201 = vector.broadcast %cst_136 : f32 to vector<1x32xf32>
    %202 = arith.divf %200, %201 : vector<1x32xf32>
    %cst_137 = arith.constant 9.99999974E-6 : f32
    %203 = vector.broadcast %cst_137 : f32 to vector<1x32xf32>
    %204 = arith.addf %202, %203 : vector<1x32xf32>
    %205 = math.rsqrt %204 : vector<1x32xf32>
    %206 = vector.broadcast %205 : vector<1x32xf32> to vector<2x32xf32>
    %207 = arith.mulf %197, %206 : vector<2x32xf32>
    %208 = vector.broadcast %186 : vector<1x32xf32> to vector<2x32xf32>
    %209 = arith.mulf %207, %208 : vector<2x32xf32>
    %210 = vector.broadcast %187 : vector<1x32xf32> to vector<2x32xf32>
    %211 = arith.addf %209, %210 : vector<2x32xf32>
    %212 = vector.extract_strided_slice %190 {offsets = [0, 32], sizes = [2, 32], strides = [1, 1]} : vector<2x64xf32> to vector<2x32xf32>
    %cst_138 = arith.constant dense<0.000000e+00> : vector<32xf32>
    %213 = vector.multi_reduction <add>, %212, %cst_138 [0] : vector<2x32xf32> to vector<32xf32>
    %214 = vector.shape_cast %213 : vector<32xf32> to vector<1x32xf32>
    %cst_139 = arith.constant 2.000000e+00 : f32
    %215 = vector.broadcast %cst_139 : f32 to vector<1x32xf32>
    %216 = arith.divf %214, %215 : vector<1x32xf32>
    %217 = vector.broadcast %216 : vector<1x32xf32> to vector<2x32xf32>
    %218 = arith.subf %212, %217 : vector<2x32xf32>
    %219 = arith.mulf %218, %218 : vector<2x32xf32>
    %cst_140 = arith.constant dense<0.000000e+00> : vector<32xf32>
    %220 = vector.multi_reduction <add>, %219, %cst_140 [0] : vector<2x32xf32> to vector<32xf32>
    %221 = vector.shape_cast %220 : vector<32xf32> to vector<1x32xf32>
    %cst_141 = arith.constant 2.000000e+00 : f32
    %222 = vector.broadcast %cst_141 : f32 to vector<1x32xf32>
    %223 = arith.divf %221, %222 : vector<1x32xf32>
    %cst_142 = arith.constant 9.99999974E-6 : f32
    %224 = vector.broadcast %cst_142 : f32 to vector<1x32xf32>
    %225 = arith.addf %223, %224 : vector<1x32xf32>
    %226 = math.rsqrt %225 : vector<1x32xf32>
    %227 = vector.broadcast %226 : vector<1x32xf32> to vector<2x32xf32>
    %228 = arith.mulf %218, %227 : vector<2x32xf32>
    %229 = vector.broadcast %188 : vector<1x32xf32> to vector<2x32xf32>
    %230 = arith.mulf %228, %229 : vector<2x32xf32>
    %231 = vector.broadcast %189 : vector<1x32xf32> to vector<2x32xf32>
    %232 = arith.addf %230, %231 : vector<2x32xf32>
    %233 = arith.negf %232 : vector<2x32xf32>
    %234 = math.exp %233 : vector<2x32xf32>
    %cst_143 = arith.constant 1.000000e+00 : f32
    %235 = vector.broadcast %cst_143 : f32 to vector<2x32xf32>
    %236 = arith.addf %235, %234 : vector<2x32xf32>
    %237 = arith.divf %235, %236 : vector<2x32xf32>
    %238 = arith.mulf %211, %237 : vector<2x32xf32>
    %c0_144 = arith.constant 0 : index
    %c0_145 = arith.constant 0 : index
    %239 = vector.load %arg10[%c0_144, %c0_145] : memref<16x32xf32, #tpu.memory_space<vmem>>, vector<2x32xf32>
    tpu.vector_store %arg10[%c0_144, %c0_145], %238 {strides = array<i32>} : memref<16x32xf32, #tpu.memory_space<vmem>>, vector<2x32xf32>,
    %240 = vector.extract_strided_slice %185 {offsets = [2, 0], sizes = [2, 64], strides = [1, 1]} : vector<4x64xf32> to vector<2x64xf32>
    %241 = vector.extract_strided_slice %240 {offsets = [0, 0], sizes = [2, 32], strides = [1, 1]} : vector<2x64xf32> to vector<2x32xf32>
    %cst_146 = arith.constant dense<0.000000e+00> : vector<32xf32>
    %242 = vector.multi_reduction <add>, %241, %cst_146 [0] : vector<2x32xf32> to vector<32xf32>
    %243 = vector.shape_cast %242 : vector<32xf32> to vector<1x32xf32>
    %cst_147 = arith.constant 2.000000e+00 : f32
    %244 = vector.broadcast %cst_147 : f32 to vector<1x32xf32>
    %245 = arith.divf %243, %244 : vector<1x32xf32>
    %246 = vector.broadcast %245 : vector<1x32xf32> to vector<2x32xf32>
    %247 = arith.subf %241, %246 : vector<2x32xf32>
    %248 = arith.mulf %247, %247 : vector<2x32xf32>
    %cst_148 = arith.constant dense<0.000000e+00> : vector<32xf32>
    %249 = vector.multi_reduction <add>, %248, %cst_148 [0] : vector<2x32xf32> to vector<32xf32>
    %250 = vector.shape_cast %249 : vector<32xf32> to vector<1x32xf32>
    %cst_149 = arith.constant 2.000000e+00 : f32
    %251 = vector.broadcast %cst_149 : f32 to vector<1x32xf32>
    %252 = arith.divf %250, %251 : vector<1x32xf32>
    %cst_150 = arith.constant 9.99999974E-6 : f32
    %253 = vector.broadcast %cst_150 : f32 to vector<1x32xf32>
    %254 = arith.addf %252, %253 : vector<1x32xf32>
    %255 = math.rsqrt %254 : vector<1x32xf32>
    %256 = vector.broadcast %255 : vector<1x32xf32> to vector<2x32xf32>
    %257 = arith.mulf %247, %256 : vector<2x32xf32>
    %258 = vector.broadcast %186 : vector<1x32xf32> to vector<2x32xf32>
    %259 = arith.mulf %257, %258 : vector<2x32xf32>
    %260 = vector.broadcast %187 : vector<1x32xf32> to vector<2x32xf32>
    %261 = arith.addf %259, %260 : vector<2x32xf32>
    %262 = vector.extract_strided_slice %240 {offsets = [0, 32], sizes = [2, 32], strides = [1, 1]} : vector<2x64xf32> to vector<2x32xf32>
    %cst_151 = arith.constant dense<0.000000e+00> : vector<32xf32>
    %263 = vector.multi_reduction <add>, %262, %cst_151 [0] : vector<2x32xf32> to vector<32xf32>
    %264 = vector.shape_cast %263 : vector<32xf32> to vector<1x32xf32>
    %cst_152 = arith.constant 2.000000e+00 : f32
    %265 = vector.broadcast %cst_152 : f32 to vector<1x32xf32>
    %266 = arith.divf %264, %265 : vector<1x32xf32>
    %267 = vector.broadcast %266 : vector<1x32xf32> to vector<2x32xf32>
    %268 = arith.subf %262, %267 : vector<2x32xf32>
    %269 = arith.mulf %268, %268 : vector<2x32xf32>
    %cst_153 = arith.constant dense<0.000000e+00> : vector<32xf32>
    %270 = vector.multi_reduction <add>, %269, %cst_153 [0] : vector<2x32xf32> to vector<32xf32>
    %271 = vector.shape_cast %270 : vector<32xf32> to vector<1x32xf32>
    %cst_154 = arith.constant 2.000000e+00 : f32
    %272 = vector.broadcast %cst_154 : f32 to vector<1x32xf32>
    %273 = arith.divf %271, %272 : vector<1x32xf32>
    %cst_155 = arith.constant 9.99999974E-6 : f32
    %274 = vector.broadcast %cst_155 : f32 to vector<1x32xf32>
    %275 = arith.addf %273, %274 : vector<1x32xf32>
    %276 = math.rsqrt %275 : vector<1x32xf32>
    %277 = vector.broadcast %276 : vector<1x32xf32> to vector<2x32xf32>
    %278 = arith.mulf %268, %277 : vector<2x32xf32>
    %279 = vector.broadcast %188 : vector<1x32xf32> to vector<2x32xf32>
    %280 = arith.mulf %278, %279 : vector<2x32xf32>
    %281 = vector.broadcast %189 : vector<1x32xf32> to vector<2x32xf32>
    %282 = arith.addf %280, %281 : vector<2x32xf32>
    %283 = arith.negf %282 : vector<2x32xf32>
    %284 = math.exp %283 : vector<2x32xf32>
    %cst_156 = arith.constant 1.000000e+00 : f32
    %285 = vector.broadcast %cst_156 : f32 to vector<2x32xf32>
    %286 = arith.addf %285, %284 : vector<2x32xf32>
    %287 = arith.divf %285, %286 : vector<2x32xf32>
    %288 = arith.mulf %261, %287 : vector<2x32xf32>
    %c8_157 = arith.constant 8 : index
    %c0_158 = arith.constant 0 : index
    %289 = vector.load %arg10[%c8_157, %c0_158] : memref<16x32xf32, #tpu.memory_space<vmem>>, vector<2x32xf32>
    tpu.vector_store %arg10[%c8_157, %c0_158], %288 {strides = array<i32>} : memref<16x32xf32, #tpu.memory_space<vmem>>, vector<2x32xf32>,
    %c13 = arith.constant 13 : index
    %c0_159 = arith.constant 0 : index
    %290 = vector.load %arg2[%c13, %c0_159] : memref<24x128xf32, #tpu.memory_space<vmem>>, vector<1x64xf32>
    %c15 = arith.constant 15 : index
    %c0_160 = arith.constant 0 : index
    %291 = vector.load %arg2[%c15, %c0_160] : memref<24x128xf32, #tpu.memory_space<vmem>>, vector<1x64xf32>
    %292 = arith.negf %291 : vector<1x64xf32>
    %293 = math.exp %292 : vector<1x64xf32>
    %cst_161 = arith.constant 1.000000e+00 : f32
    %294 = vector.broadcast %cst_161 : f32 to vector<1x64xf32>
    %295 = arith.addf %294, %293 : vector<1x64xf32>
    %296 = arith.divf %294, %295 : vector<1x64xf32>
    %297 = arith.mulf %290, %296 : vector<1x64xf32>
    %c16_162 = arith.constant 16 : index
    %c0_163 = arith.constant 0 : index
    %298 = vector.load %arg2[%c16_162, %c0_163] : memref<24x128xf32, #tpu.memory_space<vmem>>, vector<1x64xf32>
    %c17_164 = arith.constant 17 : index
    %c0_165 = arith.constant 0 : index
    %299 = vector.load %arg2[%c17_164, %c0_165] : memref<24x128xf32, #tpu.memory_space<vmem>>, vector<1x1xf32>
    %300 = arith.mulf %297, %298 : vector<1x64xf32>
    %cst_166 = arith.constant dense<0.000000e+00> : vector<1xf32>
    %301 = vector.multi_reduction <add>, %300, %cst_166 [1] : vector<1x64xf32> to vector<1xf32>
    %302 = vector.shape_cast %301 : vector<1xf32> to vector<1x1xf32>
    %303 = arith.addf %302, %299 : vector<1x1xf32>
    %304 = arith.negf %303 : vector<1x1xf32>
    %305 = math.exp %304 : vector<1x1xf32>
    %cst_167 = arith.constant 1.000000e+00 : f32
    %306 = vector.broadcast %cst_167 : f32 to vector<1x1xf32>
    %307 = arith.addf %306, %305 : vector<1x1xf32>
    %308 = arith.divf %306, %307 : vector<1x1xf32>
    %309 = vector.shape_cast %308 : vector<1x1xf32> to vector<1x1xf32>
    %310 = vector.broadcast %309 : vector<1x1xf32> to vector<2x1xf32>
    %c0_168 = arith.constant 0 : index
    %c0_169 = arith.constant 0 : index
    %311 = vector.load %arg3[%c0_168, %c0_169] : memref<2x1xf32, #tpu.memory_space<vmem>>, vector<2x1xf32>
    tpu.vector_store %arg3[%c0_168, %c0_169], %310 {strides = array<i32>} : memref<2x1xf32, #tpu.memory_space<vmem>>, vector<2x1xf32>,
    return
  }
}

</mosaic_0001>

<llo_original>
// kernel: discriminator_forward.1
$region0: #{discriminator_forward.1}
  #allocation0 [shape = 'u32[]', space=smem, size = 0x4, offset = 0x4, fixed_abs, tag = 'smem constant byte address 0x4 - core index']
  #allocation1 [shape = 'u32[144,128]{1,0:T(1,128)}', space=vmem, size = 0x12000, scoped, tag = 'internal scratch']
  #allocation2 [shape = 'f32[16,12]{1,0:T(8,128)}', space=vmem, size = 0x2000, scoped, tag = 'scratch operand']
  #allocation3 [shape = 'f32[8,48]{1,0:T(8,128)}', space=vmem, size = 0x1000, scoped, tag = 'scratch operand']
  #allocation4 [shape = 'f32[4,96]{1,0:T(4,128)}', space=vmem, size = 0x800, scoped, tag = 'scratch operand']
  #allocation5 [shape = 'f32[2,96]{1,0:T(2,128)}', space=vmem, size = 0x400, scoped, tag = 'scratch operand']
  #allocation6 [shape = 'f32[32,16]{1,0:T(8,128)}', space=vmem, size = 0x4000, scoped, tag = 'scratch operand']
  #allocation7 [shape = 'f32[16,32]{1,0:T(8,128)}', space=vmem, size = 0x2000, scoped, tag = 'scratch operand']
  #allocation8 [shape = 'f32[16,32]{1,0:T(8,128)}', space=vmem, size = 0x2000, scoped, tag = 'scratch operand']
  %s0 = inlined_call_operand.vmem [shape: f32[48,4], index: 0, kind: input, shape index: {}]
  %s1 = inlined_call_operand.vmem [shape: bf16[256,128], index: 1, kind: input, shape index: {}]
  %s2 = inlined_call_operand.hbm [shape: f32[24,128], index: 2, kind: input, shape index: {}]
  %s3 = inlined_call_operand.vmem [shape: f32[2,1], index: 3, kind: output, shape index: {}]
  %s4 = sld [smem:[#allocation0]]
  $region26: #{discriminator_forward.1} parent=0
    _
  %s6 = ssub.s32 1, %s4
  %s7 = scalar_select 0, %s6, %s4
  $region1: #{discriminator_forward.1} parent=0
    #allocation9 [shape = 'u8[12288]{0}', space=vmem, size = 0x3000, scoped, tag = 'input window, operand 2, single buffered']
    #allocation10 [shape = 's32[1]{0}', space=sflag, size = 0x4, scoped, tag = 'scoped memory for discriminator_forward.1']
    %8 = vsyncpa [#allocation10], 0
    // Predicated region
    $region2: #{discriminator_forward.1} parent=1 // pred_check
      _
    $region3: #{discriminator_forward.1} parent=1 // pred_check_branch
      %10 = sbr.rel (0) target = $region5
    $region4: #{discriminator_forward.1} parent=1 // pred_region
      _
    $region5: #{discriminator_forward.1} parent=1 // pred_fallthru
      _
    // Predicated region
    $region6: #{discriminator_forward.1} parent=1 // pred_check
      _
    $region7: #{discriminator_forward.1} parent=1 // pred_check_branch
      %12 = sbr.rel (0) target = $region9
    $region8: #{discriminator_forward.1} parent=1 // pred_region
      _
    $region9: #{discriminator_forward.1} parent=1 // pred_fallthru
      _
    // Predicated region
    $region10: #{discriminator_forward.1} parent=1 // pred_check
      _
    $region11: #{discriminator_forward.1} parent=1 // pred_check_branch
      %14 = sbr.rel (0) target = $region13
    $region12: #{discriminator_forward.1} parent=1 // pred_region
      %s16 = ssub.s32 384, 384
      %17 = vsyncadd [#allocation10], %s16
      %s18 = sshll.u32 [#allocation9], 4
      %s19 = int_to_ptr.vmem [resolvable:$true] %s18
      %24 = dma.hbm_to_vmem [thread:$0]  %s2, 384, %s19, [#allocation10], 128, 128, 8
    $region13: #{discriminator_forward.1} parent=1 // pred_fallthru
      _
    // Predicated region
    $region14: #{discriminator_forward.1} parent=1 // pred_check
      _
    $region15: #{discriminator_forward.1} parent=1 // pred_check_branch
      %26 = sbr.rel (0) target = $region17
    $region16: #{discriminator_forward.1} parent=1 // pred_region
      %27 = dma.done [#allocation10], 384
    $region17: #{discriminator_forward.1} parent=1 // pred_fallthru
      _
    %vm29 = vcmask 122880
    %30 = vst.msk [vmem:[#allocation6 + $0x8] sm:$0x1] %vm29, 0.0
    %31 = vst.msk [vmem:[#allocation6 + $0x18] sm:$0x1] %vm29, 0.0
    %vm32 = vcmask 253952
    %33 = vst.msk [vmem:[#allocation7 + $0x4] sm:$0x1] %vm32, 0.0
    %34 = vst.msk [vmem:[#allocation7 + $0xc] sm:$0x1] %vm32, 0.0
    %v35 = vld [vmem:[%s0] ss:$2 sm:$0xff]
    %vm36 = vcmask 31744
    %37 = vst.msk [vmem:[#allocation2] sm:$0xff] %vm36, %v35
    %s38 = scalar_lea.vmem %s0, 1
    %v39 = vld [vmem:[%s38] ss:$2 sm:$0xff]
    %41 = vrot.lane.b32.xlu0 %v39, 4
    %v42 = vpop.permute.xlu0 %41
    %vm44 = vcmask 64544
    %45 = vst.msk [vmem:[#allocation2] sm:$0xff] %vm44, %v42
    %s46 = scalar_lea.vmem %s0, 2
    %v47 = vld [vmem:[%s46] ss:$2 sm:$0xff]
    %49 = vrot.lane.b32.xlu0 %v47, 8
    %v50 = vpop.permute.xlu0 %49
    %vm52 = vcmask 97344
    %53 = vst.msk [vmem:[#allocation2] sm:$0xff] %vm52, %v50
    %s54 = scalar_lea.vmem %s0, 24
    %v55 = vld [vmem:[%s54] ss:$2 sm:$0xff]
    %56 = vst.msk [vmem:[#allocation2 + $0x8] sm:$0xff] %vm36, %v55
    %s57 = scalar_lea.vmem %s0, 25
    %v58 = vld [vmem:[%s57] ss:$2 sm:$0xff]
    %60 = vrot.lane.b32.xlu0 %v58, 4
    %v61 = vpop.permute.xlu0 %60
    %63 = vst.msk [vmem:[#allocation2 + $0x8] sm:$0xff] %vm44, %v61
    %s64 = scalar_lea.vmem %s0, 26
    %v65 = vld [vmem:[%s64] ss:$2 sm:$0xff]
    %67 = vrot.lane.b32.xlu0 %v65, 8
    %v68 = vpop.permute.xlu0 %67
    %70 = vst.msk [vmem:[#allocation2 + $0x8] sm:$0xff] %vm52, %v68
    %v71 = vld [vmem:[%s1] sm:$0xf]
    %v72 = vld [vmem:[%s1 + $0x4] sm:$0x3]
    %v73 = vld [vmem:[#allocation9] sm:$0x1]
    %v74 = vld [vmem:[#allocation2] sm:$0xff]
    %v75 = vld [vmem:[#allocation2 + $0x8] sm:$0xff]
    %v76 = vpack.c.bf16 %v75, %v74
    %v77 = vlaneseq
    %v78 = vshrl.u32 %v77, 7
    %v79 = vsub.s32 0, %v78
    %v80 = vrot.slane %v73, %v79
    %v83 = vunpack.c.l.b16 %v71
    %v84 = vunpack.c.l.b16 %v72
    %v85 = vpack.c.b16 %v84, %v83
    %vm86 = vcmask 97280
    %v88 = vsel %vm86, %v76, 0
    %vm90 = vcmask 1045504
    %v92 = vsel %vm90, %v85, 0
    %94 = vmatprep.subr.bf16.mxu0 0
    %95 = vmatpush1.bf16.msra.mxu0 %v92
    %96 = vmatprep.subr.bf16.mxu0 0
    %97 = vmatpush1.bf16.msra.mxu0 0
    %98 = vmatprep.subr.bf16.mxu0 0
    %99 = vmatpush1.bf16.msra.mxu0 0
    %100 = vmatprep.subr.bf16.mxu0 0
    %101 = vmatpush1.bf16.msra.mxu0 0
    %102 = vmatprep.subr.bf16.mxu0 0
    %103 = vmatpush1.bf16.msra.mxu0 0
    %104 = vmatprep.subr.bf16.mxu0 0
    %105 = vmatpush1.bf16.msra.mxu0 0
    %106 = vmatprep.subr.bf16.mxu0 0
    %107 = vmatpush1.bf16.msra.mxu0 0
    %108 = vmatprep.subr.bf16.mxu0 0
    %109 = vmatpush1.bf16.msra.mxu0 0
    %110 = vmatprep.subr.bf16.mxu0 0
    %111 = vmatpush1.bf16.msra.mxu0 0
    %112 = vmatprep.subr.bf16.mxu0 0
    %113 = vmatpush1.bf16.msra.mxu0 0
    %114 = vmatprep.subr.bf16.mxu0 0
    %115 = vmatpush1.bf16.msra.mxu0 0
    %116 = vmatprep.subr.bf16.mxu0 0
    %117 = vmatpush1.bf16.msra.mxu0 0
    %118 = vmatprep.subr.bf16.mxu0 0
    %119 = vmatpush1.bf16.msra.mxu0 0
    %120 = vmatprep.subr.bf16.mxu0 0
    %121 = vmatpush1.bf16.msra.mxu0 0
    %122 = vmatprep.subr.bf16.mxu0 0
    %123 = vmatpush1.bf16.msra.mxu0 0
    %124 = vmatprep.subr.bf16.mxu0 0
    %125 = vmatpush1.bf16.msra.mxu0 0
    %126 = vmatprep.mubr.bf16.mxu0 0
    %127 = vmatmul.mubr.bf16.gmra.mrb[0].mxu0 %v88
    %v128 = vpop.f32.mrb[0].mxu0
    %v129 = vadd.f32 %v80, %v128
    %v130 = vpop.f32.mrb[0].mxu0
    %v131 = vpop.f32.mrb[0].mxu0
    %v132 = vadd.f32 %v80, %v131
    %v133 = vpop.f32.mrb[0].mxu0
    %134 = vdwg.mxu0
    %vm135 = vcmp.gt.f32.partialorder %v129, 0.0
    %vm136 = vcmp.gt.f32.partialorder %v132, 0.0
    %v137 = vmul.f32 %v129, 0.2
    %v138 = vmul.f32 %v132, 0.2
    %v139 = vsel %vm135, %v129, %v137
    %v140 = vsel %vm136, %v132, %v138
    %v141 = vxor.u32 %v139, 2147483648
    %v142 = vxor.u32 %v140, 2147483648
    %v143 = vmul.f32 %v141, 1.442695
    %v144 = vpow.pop %v143
    %v145 = vmul.f32 %v142, 1.442695
    %v146 = vpow.pop %v145
    %v147 = vadd.f32 %v144, 1.0
    %v148 = vadd.f32 %v146, 1.0
    %v149 = vrcp.pop %v147
    %v150 = vmul.f32 1.0, %v149
    %v151 = vrcp.pop %v148
    %v152 = vmul.f32 1.0, %v151
    %155 = vrot.lane.b32.xlu0 %v150, 112
    %v156 = vpop.permute.xlu0 %155
    %157 = vrot.lane.b32.xlu0 %v152, 112
    %v158 = vpop.permute.xlu0 %157
    %v161 = vmul.f32 %v139, %v156
    %v162 = vmul.f32 %v140, %v158
    %vm163 = vcmask 130048
    %164 = vst.msk [vmem:[#allocation6] sm:$0xff] %vm163, %v161
    %165 = vst.msk [vmem:[#allocation6 + $0x10] sm:$0xff] %vm163, %v162
    %v166 = vld [vmem:[#allocation6] ss:$2 sm:$0xf]
    %vm167 = vcmask 125952
    %168 = vst.msk [vmem:[#allocation3] sm:$0xf] %vm167, %v166
    %s169 = scalar_lea.vmem [#allocation6], 1
    %v170 = vld [vmem:[%s169] ss:$2 sm:$0xf]
    %172 = vrot.lane.b32.xlu0 %v170, 16
    %v173 = vpop.permute.xlu0 %172
    %vm175 = vcmask 257152
    %176 = vst.msk [vmem:[#allocation3] sm:$0xf] %vm175, %v173
    %s177 = scalar_lea.vmem [#allocation6], 2
    %v178 = vld [vmem:[%s177] ss:$2 sm:$0xf]
    %180 = vrot.lane.b32.xlu0 %v178, 32
    %v181 = vpop.permute.xlu0 %180
    %vm183 = vcmask 388352
    %184 = vst.msk [vmem:[#allocation3] sm:$0xf] %vm183, %v181
    %s185 = scalar_lea.vmem [#allocation6], 16
    %v186 = vld [vmem:[%s185] ss:$2 sm:$0xf]
    %187 = vst.msk [vmem:[#allocation3 + $0x4] sm:$0xf] %vm167, %v186
    %s188 = scalar_lea.vmem [#allocation6], 17
    %v189 = vld [vmem:[%s188] ss:$2 sm:$0xf]
    %191 = vrot.lane.b32.xlu0 %v189, 16
    %v192 = vpop.permute.xlu0 %191
    %194 = vst.msk [vmem:[#allocation3 + $0x4] sm:$0xf] %vm175, %v192
    %s195 = scalar_lea.vmem [#allocation6], 18
    %v196 = vld [vmem:[%s195] ss:$2 sm:$0xf]
    %198 = vrot.lane.b32.xlu0 %v196, 32
    %v199 = vpop.permute.xlu0 %198
    %201 = vst.msk [vmem:[#allocation3 + $0x4] sm:$0xf] %vm183, %v199
    %v202 = vld [vmem:[%s1 + $0x8] sm:$0xf]
    %v203 = vld [vmem:[%s1 + $0xc] sm:$0xf]
    %v204 = vld [vmem:[%s1 + $0x10] sm:$0xf]
    %v205 = vld [vmem:[%s1 + $0x14] sm:$0xf]
    %v206 = vld [vmem:[%s1 + $0x18] sm:$0xf]
    %v207 = vld [vmem:[%s1 + $0x1c] sm:$0xf]
    %v208 = vld [vmem:[#allocation9 + $0x1] sm:$0x1]
    %v209 = vld [vmem:[#allocation3] sm:$0xff]
    %v210 = vpack.c.bf16 %v209, %v209
    %v211 = vlaneseq
    %v212 = vshrl.u32 %v211, 7
    %v213 = vsub.s32 0, %v212
    %v214 = vrot.slane %v208, %v213
    %v221 = vunpack.c.l.b16 %v202
    %v222 = vunpack.c.l.b16 %v203
    %v223 = vunpack.c.l.b16 %v204
    %v224 = vunpack.c.l.b16 %v205
    %v225 = vunpack.c.l.b16 %v206
    %v226 = vunpack.c.l.b16 %v207
    %v227 = vpack.c.b16 %v222, %v221
    %v228 = vpack.c.b16 %v224, %v223
    %v229 = vpack.c.b16 %v226, %v225
    %vm233 = vcmask 392192
    %v235 = vsel %vm233, %v210, 0
    %237 = vmatprep.subr.bf16.mxu0 0
    %238 = vmatpush1.bf16.msra.mxu0 %v227
    %239 = vmatprep.subr.bf16.mxu0 0
    %240 = vmatpush1.bf16.msra.mxu0 %v228
    %241 = vmatprep.subr.bf16.mxu0 0
    %242 = vmatpush1.bf16.msra.mxu0 %v229
    %243 = vmatprep.subr.bf16.mxu0 0
    %244 = vmatpush1.bf16.msra.mxu0 0
    %245 = vmatprep.subr.bf16.mxu0 0
    %246 = vmatpush1.bf16.msra.mxu0 0
    %247 = vmatprep.subr.bf16.mxu0 0
    %248 = vmatpush1.bf16.msra.mxu0 0
    %249 = vmatprep.subr.bf16.mxu0 0
    %250 = vmatpush1.bf16.msra.mxu0 0
    %251 = vmatprep.subr.bf16.mxu0 0
    %252 = vmatpush1.bf16.msra.mxu0 0
    %253 = vmatprep.subr.bf16.mxu0 0
    %254 = vmatpush1.bf16.msra.mxu0 0
    %255 = vmatprep.subr.bf16.mxu0 0
    %256 = vmatpush1.bf16.msra.mxu0 0
    %257 = vmatprep.subr.bf16.mxu0 0
    %258 = vmatpush1.bf16.msra.mxu0 0
    %259 = vmatprep.subr.bf16.mxu0 0
    %260 = vmatpush1.bf16.msra.mxu0 0
    %261 = vmatprep.subr.bf16.mxu0 0
    %262 = vmatpush1.bf16.msra.mxu0 0
    %263 = vmatprep.subr.bf16.mxu0 0
    %264 = vmatpush1.bf16.msra.mxu0 0
    %265 = vmatprep.subr.bf16.mxu0 0
    %266 = vmatpush1.bf16.msra.mxu0 0
    %267 = vmatprep.subr.bf16.mxu0 0
    %268 = vmatpush1.bf16.msra.mxu0 0
    %269 = vmatprep.mubr.bf16.mxu0 0
    %270 = vmatmul.mubr.bf16.gmra.mrb[0].mxu0 %v235
    %v271 = vpop.f32.mrb[0].mxu0
    %v272 = vadd.f32 %v214, %v271
    %v273 = vpop.f32.mrb[0].mxu0
    %v274 = vpop.f32.mrb[0].mxu0
    %v275 = vpop.f32.mrb[0].mxu0
    %276 = vdwg.mxu0
    %v277 = vld [vmem:[#allocation9 + $0x4] sm:$0x1]
    %v278 = vld [vmem:[#allocation9 + $0x5] sm:$0x1]
    %v279 = vld [vmem:[#allocation9 + $0x6] sm:$0x1]
    %v280 = vld [vmem:[#allocation9 + $0x7] sm:$0x1]
    %vm281 = vcmask 257024
    %v282 = vsel %vm281, %v272, 0.0
    %v283 = vrot.slane %v282, 4
    %v284 = vadd.f32 %v282, %v283
    %v285 = vrot.slane %v284, 2
    %v286 = vadd.f32 %v284, %v285
    %v287 = vrot.slane %v286, 1
    %v288 = vadd.f32 %v286, %v287
    %v289 = vrcp.pop 4.0
    %v290 = vmul.f32 %v288, %v289
    %v291 = vsub.f32 %v272, %v290
    %v292 = vmul.f32 %v291, %v291
    %v293 = vsel %vm281, %v292, 0.0
    %v294 = vrot.slane %v293, 4
    %v295 = vadd.f32 %v293, %v294
    %v296 = vrot.slane %v295, 2
    %v297 = vadd.f32 %v295, %v296
    %v298 = vrot.slane %v297, 1
    %v299 = vadd.f32 %v297, %v298
    %v300 = vmul.f32 %v299, %v289
    %v301 = vadd.f32 %v300, 1e-05
    %v302 = vrsqrt.pop %v301
    %v303 = vmul.f32 %v291, %v302
    %v304 = vlaneseq
    %v305 = vshrl.u32 %v304, 7
    %v306 = vsub.s32 0, %v305
    %v307 = vrot.slane %v277, %v306
    %v308 = vmul.f32 %v303, %v307
    %v309 = vlaneseq
    %v310 = vshrl.u32 %v309, 7
    %v311 = vsub.s32 0, %v310
    %v312 = vrot.slane %v278, %v311
    %v313 = vadd.f32 %v308, %v312
    %vm314 = vcmask 519424
    %v315 = vsel %vm314, %v272, 0.0
    %v316 = vrot.slane %v315, 4
    %v317 = vadd.f32 %v315, %v316
    %v318 = vrot.slane %v317, 2
    %v319 = vadd.f32 %v317, %v318
    %v320 = vrot.slane %v319, 1
    %v321 = vadd.f32 %v319, %v320
    %v322 = vmul.f32 %v321, %v289
    %v323 = vsub.f32 %v272, %v322
    %v324 = vmul.f32 %v323, %v323
    %v325 = vsel %vm314, %v324, 0.0
    %v326 = vrot.slane %v325, 4
    %v327 = vadd.f32 %v325, %v326
    %v328 = vrot.slane %v327, 2
    %v329 = vadd.f32 %v327, %v328
    %v330 = vrot.slane %v329, 1
    %v331 = vadd.f32 %v329, %v330
    %v332 = vmul.f32 %v331, %v289
    %v333 = vadd.f32 %v332, 1e-05
    %v334 = vrsqrt.pop %v333
    %v335 = vmul.f32 %v323, %v334
    %v336 = vlaneseq
    %v337 = vshrl.u32 %v336, 7
    %v338 = vsub.s32 0, %v337
    %v339 = vrot.slane %v279, %v338
    %341 = vrot.lane.b32.xlu0 %v339, 32
    %v342 = vpop.permute.xlu0 %341
    %v344 = vmul.f32 %v335, %v342
    %v345 = vlaneseq
    %v346 = vshrl.u32 %v345, 7
    %v347 = vsub.s32 0, %v346
    %v348 = vrot.slane %v280, %v347
    %350 = vrot.lane.b32.xlu0 %v348, 32
    %v351 = vpop.permute.xlu0 %350
    %v353 = vadd.f32 %v344, %v351
    %v354 = vxor.u32 %v353, 2147483648
    %v355 = vmul.f32 %v354, 1.442695
    %v356 = vpow.pop %v355
    %v357 = vadd.f32 %v356, 1.0
    %v358 = vrcp.pop %v357
    %v359 = vmul.f32 1.0, %v358
    %361 = vrot.lane.b32.xlu0 %v359, 96
    %v362 = vpop.permute.xlu0 %361
    %v364 = vmul.f32 %v313, %v362
    %365 = vst.msk [vmem:[#allocation7] sm:$0xf] %vm281, %v364
    %v367 = vrot.slane %v272, 4
    %v369 = vsel %vm281, %v367, 0.0
    %v370 = vrot.slane %v369, 4
    %v371 = vadd.f32 %v369, %v370
    %v372 = vrot.slane %v371, 2
    %v373 = vadd.f32 %v371, %v372
    %v374 = vrot.slane %v373, 1
    %v375 = vadd.f32 %v373, %v374
    %v376 = vmul.f32 %v375, %v289
    %v377 = vsub.f32 %v272, %v376
    %v378 = vmul.f32 %v377, %v377
    %v380 = vrot.slane %v378, 4
    %v382 = vsel %vm281, %v380, 0.0
    %v383 = vrot.slane %v382, 4
    %v384 = vadd.f32 %v382, %v383
    %v385 = vrot.slane %v384, 2
    %v386 = vadd.f32 %v384, %v385
    %v387 = vrot.slane %v386, 1
    %v388 = vadd.f32 %v386, %v387
    %v389 = vmul.f32 %v388, %v289
    %v390 = vadd.f32 %v389, 1e-05
    %v391 = vrsqrt.pop %v390
    %v392 = vmul.f32 %v377, %v391
    %v393 = vmul.f32 %v392, %v307
    %v394 = vadd.f32 %v393, %v312
    %v395 = vsel %vm314, %v367, 0.0
    %v396 = vrot.slane %v395, 4
    %v397 = vadd.f32 %v395, %v396
    %v398 = vrot.slane %v397, 2
    %v399 = vadd.f32 %v397, %v398
    %v400 = vrot.slane %v399, 1
    %v401 = vadd.f32 %v399, %v400
    %v402 = vmul.f32 %v401, %v289
    %v403 = vsub.f32 %v272, %v402
    %v404 = vmul.f32 %v403, %v403
    %v406 = vrot.slane %v404, 4
    %v408 = vsel %vm314, %v406, 0.0
    %v409 = vrot.slane %v408, 4
    %v410 = vadd.f32 %v408, %v409
    %v411 = vrot.slane %v410, 2
    %v412 = vadd.f32 %v410, %v411
    %v413 = vrot.slane %v412, 1
    %v414 = vadd.f32 %v412, %v413
    %v415 = vmul.f32 %v414, %v289
    %v416 = vadd.f32 %v415, 1e-05
    %v417 = vrsqrt.pop %v416
    %v418 = vmul.f32 %v403, %v417
    %v419 = vmul.f32 %v418, %v342
    %v420 = vadd.f32 %v419, %v351
    %v421 = vxor.u32 %v420, 2147483648
    %v422 = vmul.f32 %v421, 1.442695
    %v423 = vpow.pop %v422
    %v424 = vadd.f32 %v423, 1.0
    %v425 = vrcp.pop %v424
    %v426 = vmul.f32 1.0, %v425
    %428 = vrot.lane.b32.xlu0 %v426, 96
    %v429 = vpop.permute.xlu0 %428
    %v431 = vmul.f32 %v394, %v429
    %vm432 = vcmask 261124
    %433 = vst.msk [vmem:[#allocation7 + $0x4] sm:$0xf0] %vm432, %v431
    %v434 = vld [vmem:[#allocation7] ss:$2 sm:$0x3]
    %vm435 = vcmask 254976
    %436 = vst.msk [vmem:[#allocation4] sm:$0x3] %vm435, %v434
    %s437 = scalar_lea.vmem [#allocation7], 1
    %v438 = vld [vmem:[%s437] ss:$2 sm:$0x3]
    %440 = vrot.lane.b32.xlu0 %v438, 32
    %v441 = vpop.permute.xlu0 %440
    %vm443 = vcmask 517376
    %444 = vst.msk [vmem:[#allocation4] sm:$0x3] %vm443, %v441
    %s445 = scalar_lea.vmem [#allocation7], 2
    %v446 = vld [vmem:[%s445] ss:$2 sm:$0x3]
    %448 = vrot.lane.b32.xlu0 %v446, 64
    %v449 = vpop.permute.xlu0 %448
    %vm451 = vcmask 779776
    %452 = vst.msk [vmem:[#allocation4] sm:$0x3] %vm451, %v449
    %s453 = scalar_lea.vmem [#allocation7], 8
    %v454 = vld [vmem:[%s453] ss:$2 sm:$0x3]
    %455 = vst.msk [vmem:[#allocation4 + $0x2] sm:$0x3] %vm435, %v454
    %s456 = scalar_lea.vmem [#allocation7], 9
    %v457 = vld [vmem:[%s456] ss:$2 sm:$0x3]
    %459 = vrot.lane.b32.xlu0 %v457, 32
    %v460 = vpop.permute.xlu0 %459
    %462 = vst.msk [vmem:[#allocation4 + $0x2] sm:$0x3] %vm443, %v460
    %s463 = scalar_lea.vmem [#allocation7], 10
    %v464 = vld [vmem:[%s463] ss:$2 sm:$0x3]
    %466 = vrot.lane.b32.xlu0 %v464, 64
    %v467 = vpop.permute.xlu0 %466
    %469 = vst.msk [vmem:[#allocation4 + $0x2] sm:$0x3] %vm451, %v467
    %v470 = vld [vmem:[%s1 + $0x20] sm:$0xf]
    %v471 = vld [vmem:[%s1 + $0x24] sm:$0xf]
    %v472 = vld [vmem:[%s1 + $0x28] sm:$0xf]
    %v473 = vld [vmem:[%s1 + $0x2c] sm:$0xf]
    %v474 = vld [vmem:[%s1 + $0x30] sm:$0xf]
    %v475 = vld [vmem:[%s1 + $0x34] sm:$0xf]
    %v476 = vld [vmem:[%s1 + $0x38] sm:$0xf]
    %v477 = vld [vmem:[%s1 + $0x3c] sm:$0xf]
    %v478 = vld [vmem:[%s1 + $0x40] sm:$0xf]
    %v479 = vld [vmem:[%s1 + $0x44] sm:$0xf]
    %v480 = vld [vmem:[%s1 + $0x48] sm:$0xf]
    %v481 = vld [vmem:[%s1 + $0x4c] sm:$0xf]
    %v482 = vld [vmem:[#allocation9 + $0x2] sm:$0x1]
    %v483 = vld [vmem:[#allocation4] sm:$0xf]
    %v484 = vpack.c.bf16 %v483, %v483
    %v485 = vlaneseq
    %v486 = vshrl.u32 %v485, 7
    %v487 = vsub.s32 0, %v486
    %v488 = vrot.slane %v482, %v487
    %v501 = vunpack.c.l.b16 %v470
    %v502 = vunpack.c.l.b16 %v471
    %v503 = vunpack.c.l.b16 %v472
    %v504 = vunpack.c.l.b16 %v473
    %v505 = vunpack.c.l.b16 %v474
    %v506 = vunpack.c.l.b16 %v475
    %v507 = vunpack.c.l.b16 %v476
    %v508 = vunpack.c.l.b16 %v477
    %v509 = vunpack.c.l.b16 %v478
    %v510 = vunpack.c.l.b16 %v479
    %v511 = vunpack.c.l.b16 %v480
    %v512 = vunpack.c.l.b16 %v481
    %v513 = vpack.c.b16 %v502, %v501
    %v514 = vpack.c.b16 %v504, %v503
    %v515 = vpack.c.b16 %v506, %v505
    %v516 = vpack.c.b16 %v508, %v507
    %v517 = vpack.c.b16 %v510, %v509
    %v518 = vpack.c.b16 %v512, %v511
    %vm525 = vcmask 785408
    %v527 = vsel %vm525, %v484, 0
    %529 = vmatprep.subr.bf16.mxu0 0
    %530 = vmatpush1.bf16.msra.mxu0 %v513
    %531 = vmatprep.subr.bf16.mxu0 0
    %532 = vmatpush1.bf16.msra.mxu0 %v514
    %533 = vmatprep.subr.bf16.mxu0 0
    %534 = vmatpush1.bf16.msra.mxu0 %v515
    %535 = vmatprep.subr.bf16.mxu0 0
    %536 = vmatpush1.bf16.msra.mxu0 %v516
    %537 = vmatprep.subr.bf16.mxu0 0
    %538 = vmatpush1.bf16.msra.mxu0 %v517
    %539 = vmatprep.subr.bf16.mxu0 0
    %540 = vmatpush1.bf16.msra.mxu0 %v518
    %541 = vmatprep.subr.bf16.mxu0 0
    %542 = vmatpush1.bf16.msra.mxu0 0
    %543 = vmatprep.subr.bf16.mxu0 0
    %544 = vmatpush1.bf16.msra.mxu0 0
    %545 = vmatprep.subr.bf16.mxu0 0
    %546 = vmatpush1.bf16.msra.mxu0 0
    %547 = vmatprep.subr.bf16.mxu0 0
    %548 = vmatpush1.bf16.msra.mxu0 0
    %549 = vmatprep.subr.bf16.mxu0 0
    %550 = vmatpush1.bf16.msra.mxu0 0
    %551 = vmatprep.subr.bf16.mxu0 0
    %552 = vmatpush1.bf16.msra.mxu0 0
    %553 = vmatprep.subr.bf16.mxu0 0
    %554 = vmatpush1.bf16.msra.mxu0 0
    %555 = vmatprep.subr.bf16.mxu0 0
    %556 = vmatpush1.bf16.msra.mxu0 0
    %557 = vmatprep.subr.bf16.mxu0 0
    %558 = vmatpush1.bf16.msra.mxu0 0
    %559 = vmatprep.subr.bf16.mxu0 0
    %560 = vmatpush1.bf16.msra.mxu0 0
    %561 = vmatprep.mubr.bf16.mxu0 0
    %562 = vmatmul.mubr.bf16.gmra.mrb[0].mxu0 %v527
    %v563 = vpop.f32.mrb[0].mxu0
    %v564 = vadd.f32 %v488, %v563
    %v565 = vpop.f32.mrb[0].mxu0
    %v566 = vpop.f32.mrb[0].mxu0
    %v567 = vpop.f32.mrb[0].mxu0
    %568 = vdwg.mxu0
    %v569 = vld [vmem:[#allocation9 + $0x8] sm:$0x1]
    %v570 = vld [vmem:[#allocation9 + $0x9] sm:$0x1]
    %v571 = vld [vmem:[#allocation9 + $0xa] sm:$0x1]
    %v572 = vld [vmem:[#allocation9 + $0xb] sm:$0x1]
    %v573 = vsel %vm435, %v564, 0.0
    %v574 = vrot.slane %v573, 4
    %v575 = vadd.f32 %v573, %v574
    %v576 = vrot.slane %v575, 2
    %v577 = vadd.f32 %v575, %v576
    %v578 = vrot.slane %v577, 1
    %v579 = vadd.f32 %v577, %v578
    %v580 = vrcp.pop 2.0
    %v581 = vmul.f32 %v579, %v580
    %v582 = vsub.f32 %v564, %v581
    %v583 = vmul.f32 %v582, %v582
    %v584 = vsel %vm435, %v583, 0.0
    %v585 = vrot.slane %v584, 4
    %v586 = vadd.f32 %v584, %v585
    %v587 = vrot.slane %v586, 2
    %v588 = vadd.f32 %v586, %v587
    %v589 = vrot.slane %v588, 1
    %v590 = vadd.f32 %v588, %v589
    %v591 = vmul.f32 %v590, %v580
    %v592 = vadd.f32 %v591, 1e-05
    %v593 = vrsqrt.pop %v592
    %v594 = vmul.f32 %v582, %v593
    %v595 = vlaneseq
    %v596 = vshrl.u32 %v595, 7
    %v597 = vsub.s32 0, %v596
    %v598 = vrot.slane %v569, %v597
    %v599 = vmul.f32 %v594, %v598
    %v600 = vlaneseq
    %v601 = vshrl.u32 %v600, 7
    %v602 = vsub.s32 0, %v601
    %v603 = vrot.slane %v570, %v602
    %v604 = vadd.f32 %v599, %v603
    %v605 = vsel %vm443, %v564, 0.0
    %v606 = vrot.slane %v605, 4
    %v607 = vadd.f32 %v605, %v606
    %v608 = vrot.slane %v607, 2
    %v609 = vadd.f32 %v607, %v608
    %v610 = vrot.slane %v609, 1
    %v611 = vadd.f32 %v609, %v610
    %v612 = vmul.f32 %v611, %v580
    %v613 = vsub.f32 %v564, %v612
    %v614 = vmul.f32 %v613, %v613
    %v615 = vsel %vm443, %v614, 0.0
    %v616 = vrot.slane %v615, 4
    %v617 = vadd.f32 %v615, %v616
    %v618 = vrot.slane %v617, 2
    %v619 = vadd.f32 %v617, %v618
    %v620 = vrot.slane %v619, 1
    %v621 = vadd.f32 %v619, %v620
    %v622 = vmul.f32 %v621, %v580
    %v623 = vadd.f32 %v622, 1e-05
    %v624 = vrsqrt.pop %v623
    %v625 = vmul.f32 %v613, %v624
    %v626 = vlaneseq
    %v627 = vshrl.u32 %v626, 7
    %v628 = vsub.s32 0, %v627
    %v629 = vrot.slane %v571, %v628
    %631 = vrot.lane.b32.xlu0 %v629, 32
    %v632 = vpop.permute.xlu0 %631
    %v634 = vmul.f32 %v625, %v632
    %v635 = vlaneseq
    %v636 = vshrl.u32 %v635, 7
    %v637 = vsub.s32 0, %v636
    %v638 = vrot.slane %v572, %v637
    %640 = vrot.lane.b32.xlu0 %v638, 32
    %v641 = vpop.permute.xlu0 %640
    %v643 = vadd.f32 %v634, %v641
    %v644 = vxor.u32 %v643, 2147483648
    %v645 = vmul.f32 %v644, 1.442695
    %v646 = vpow.pop %v645
    %v647 = vadd.f32 %v646, 1.0
    %v648 = vrcp.pop %v647
    %v649 = vmul.f32 1.0, %v648
    %651 = vrot.lane.b32.xlu0 %v649, 96
    %v652 = vpop.permute.xlu0 %651
    %v654 = vmul.f32 %v604, %v652
    %655 = vst.msk [vmem:[#allocation8] sm:$0x3] %vm435, %v654
    %v657 = vrot.slane %v564, 2
    %v659 = vsel %vm435, %v657, 0.0
    %v660 = vrot.slane %v659, 4
    %v661 = vadd.f32 %v659, %v660
    %v662 = vrot.slane %v661, 2
    %v663 = vadd.f32 %v661, %v662
    %v664 = vrot.slane %v663, 1
    %v665 = vadd.f32 %v663, %v664
    %v666 = vmul.f32 %v665, %v580
    %v667 = vsub.f32 %v564, %v666
    %v668 = vmul.f32 %v667, %v667
    %v670 = vrot.slane %v668, 2
    %v672 = vsel %vm435, %v670, 0.0
    %v673 = vrot.slane %v672, 4
    %v674 = vadd.f32 %v672, %v673
    %v675 = vrot.slane %v674, 2
    %v676 = vadd.f32 %v674, %v675
    %v677 = vrot.slane %v676, 1
    %v678 = vadd.f32 %v676, %v677
    %v679 = vmul.f32 %v678, %v580
    %v680 = vadd.f32 %v679, 1e-05
    %v681 = vrsqrt.pop %v680
    %v682 = vmul.f32 %v667, %v681
    %v683 = vmul.f32 %v682, %v598
    %v684 = vadd.f32 %v683, %v603
    %v685 = vsel %vm443, %v657, 0.0
    %v686 = vrot.slane %v685, 4
    %v687 = vadd.f32 %v685, %v686
    %v688 = vrot.slane %v687, 2
    %v689 = vadd.f32 %v687, %v688
    %v690 = vrot.slane %v689, 1
    %v691 = vadd.f32 %v689, %v690
    %v692 = vmul.f32 %v691, %v580
    %v693 = vsub.f32 %v564, %v692
    %v694 = vmul.f32 %v693, %v693
    %v696 = vrot.slane %v694, 2
    %v698 = vsel %vm443, %v696, 0.0
    %v699 = vrot.slane %v698, 4
    %v700 = vadd.f32 %v698, %v699
    %v701 = vrot.slane %v700, 2
    %v702 = vadd.f32 %v700, %v701
    %v703 = vrot.slane %v702, 1
    %v704 = vadd.f32 %v702, %v703
    %v705 = vmul.f32 %v704, %v580
    %v706 = vadd.f32 %v705, 1e-05
    %v707 = vrsqrt.pop %v706
    %v708 = vmul.f32 %v693, %v707
    %v709 = vmul.f32 %v708, %v632
    %v710 = vadd.f32 %v709, %v641
    %v711 = vxor.u32 %v710, 2147483648
    %v712 = vmul.f32 %v711, 1.442695
    %v713 = vpow.pop %v712
    %v714 = vadd.f32 %v713, 1.0
    %v715 = vrcp.pop %v714
    %v716 = vmul.f32 1.0, %v715
    %718 = vrot.lane.b32.xlu0 %v716, 96
    %v719 = vpop.permute.xlu0 %718
    %v721 = vmul.f32 %v684, %v719
    %vm722 = vcmask 257026
    %723 = vst.msk [vmem:[#allocation8 + $0x6] sm:$0xc] %vm722, %v721
    %v724 = vld [vmem:[#allocation9 + $0xd] sm:$0x1]
    %v725 = vld [vmem:[#allocation9 + $0xf] sm:$0x1]
    %v726 = vxor.u32 %v725, 2147483648
    %v727 = vmul.f32 %v726, 1.442695
    %v728 = vpow.pop %v727
    %v729 = vadd.f32 %v728, 1.0
    %v730 = vrcp.pop %v729
    %v731 = vmul.f32 1.0, %v730
    %v732 = vmul.f32 %v724, %v731
    %v733 = vld [vmem:[#allocation9 + $0x10] sm:$0x1]
    %v734 = vld [vmem:[#allocation9 + $0x11] sm:$0x1]
    %v735 = vmul.f32 %v732, %v733
    %vm736 = vcmask 516096
    %v737 = vsel %vm736, %v735, 0.0
    %738 = vadd.xlane.f32.xlu0 %v737
    %v739 = vpop.xlane.xlu0 %738
    %v740 = vadd.f32 %v739, %v734
    %v741 = vxor.u32 %v740, 2147483648
    %v742 = vmul.f32 %v741, 1.442695
    %v743 = vpow.pop %v742
    %v744 = vadd.f32 %v743, 1.0
    %v745 = vrcp.pop %v744
    %v746 = vmul.f32 1.0, %v745
    %v747 = vlaneseq
    %v748 = vshrl.u32 %v747, 7
    %v749 = vsub.s32 0, %v748
    %v750 = vrot.slane %v746, %v749
    %vm751 = vcmask 1024
    %752 = vst.msk [vmem:[%s3] sm:$0x3] %vm751, %v750
    // Predicated region
    $region18: #{discriminator_forward.1} parent=1 // pred_check
      _
    $region19: #{discriminator_forward.1} parent=1 // pred_check_branch
      %754 = sbr.rel (0) target = $region21
    $region20: #{discriminator_forward.1} parent=1 // pred_region
      _
    $region21: #{discriminator_forward.1} parent=1 // pred_fallthru
      _
    // Predicated region
    $region22: #{discriminator_forward.1} parent=1 // pred_check
      _
    $region23: #{discriminator_forward.1} parent=1 // pred_check_branch
      %756 = sbr.rel (0) target = $region25
    $region24: #{discriminator_forward.1} parent=1 // pred_region
      _
    $region25: #{discriminator_forward.1} parent=1 // pred_fallthru
      _
    %757 = vsyncpa [#allocation10], 1

</llo_original>
